<compile_context>
chip_gen: v7x
topology: tpu7x:2x2x1
jax: 0.10.0
libtpu: 0.0.40
codegen_flags: <defaults>
</compile_context>

<pallas_src>
import functools

import numpy as np
import jax
import jax.numpy as jnp
from jax.experimental import pallas as pl
from jax.experimental.pallas import tpu as pltpu


def ppm_cont_kernel(attcs_ref,               # VMEM (E, 1, 1) f32 (scale pre-folded), grid-resident
                    flu_ref,                 # VMEM (L, 1) f32, grid-resident
                    tri_ref,                 # VMEM (B, B) bf16 strict-upper tri, grid-resident
                    xp_ref,                  # VMEM (E, TM, N) f32 block
                    sa_ref,                  # VMEM (L, TM, N) f32 block
                    out1_ref,                # VMEM (L, TM) f32 block
                    out2_ref,                # VMEM (1, TM) f32 block
                    *, line_to_elem, tri_block, n_blocks, log_probe_cts):
    E = xp_ref.shape[0]
    L = out1_ref.shape[0]

    # --- linear attenuation coefficient, contracted over elements (VPU) ---
    # Accumulated element-by-element so only one (TM, N) temporary is live at
    # a time (no (E, TM, N) value copy / product).
    lac = xp_ref[0] * attcs_ref[0]                               # (TM, N) * (1, 1)
    for e in range(1, E):
        lac = lac + xp_ref[e] * attcs_ref[e]

    # --- exclusive cumulative sum along N: blocked strict-upper tri matmul ---
    # Each B-wide lane block does a (TM, B) x (B, B) bf16 MXU matmul (f32 acc);
    # the f32 per-block sums act as the carry and, accumulated, give the full
    # row sum for the transmission output for free.
    tri = tri_ref[...]                                           # (B, B) bf16
    excl_parts = []
    total = None                                                 # (TM, 1) f32
    for b in range(n_blocks):
        seg = lac[:, b * tri_block:(b + 1) * tri_block]          # (TM, B) f32
        part = jnp.dot(seg.astype(jnp.bfloat16), tri,
                       preferred_element_type=jnp.float32)       # (TM, B) f32
        if total is not None:
            part = part + total
        seg_sum = jnp.sum(seg, axis=-1, keepdims=True)           # (TM, 1) f32
        total = seg_sum if total is None else total + seg_sum
        excl_parts.append(part)
    att_excl = excl_parts[0] if n_blocks == 1 else jnp.concatenate(excl_parts, axis=-1)

    # Probe after attenuation; probe_cts folded into the exponent (saves a
    # (TM, N) multiply and a (TM,) multiply per grid step).
    atten = jnp.exp(log_probe_cts - att_excl)                    # (TM, N)
    out2_ref[0, :] = jnp.exp(log_probe_cts - total[:, 0])        # transmission

    # --- fluorescence: per-element / per-line accumulation ---
    # atten multiply hoisted to element level; each line is just one (TM, N)
    # multiply by SA and a lane reduction -> single lane-dense (L, TM) store.
    rows = [None] * L
    for e in range(E):
        lines = [l for l in range(L) if line_to_elem[l] == e]
        if not lines:
            continue
        axp = atten * xp_ref[e]                                  # (TM, N)
        for l in lines:
            rows[l] = jnp.sum(axp * sa_ref[l], axis=-1)          # (TM,)
    out1_ref[...] = flu_ref[...] * jnp.stack(rows, axis=0)       # (L, 1) * (L, TM)


def _vmem_capacity_bytes():
    try:
        return int(pltpu.get_tpu_info().vmem_capacity_bytes)
    except Exception:
        return 64 << 20          # conservative (v7x-class) fallback


def _per_tm_vmem_bytes(E, L, n_pad):
    # Bytes per M-row per grid step: double-buffered xp/SA input blocks plus
    # ~6 simultaneously-live f32 (TM, N) temporaries in the kernel body
    # (lac, att_excl, atten, axp_e, per-line product, bf16 matmul operands).
    return (2 * (E + L) + 6) * n_pad * 4


def _choose_block_m(E, L, M, n_pad):
    """Largest multiple-of-128 M-block whose streaming + temporary footprint
    fits a generation-aware VMEM budget, capped so there are >= 4 grid steps
    when M allows (double-buffer overlap everywhere, 2-TC sharding on v7x)."""
    cap = _vmem_capacity_bytes()
    stream_budget = (88 << 20) if cap >= (112 << 20) else (36 << 20)
    per_tm = _per_tm_vmem_bytes(E, L, n_pad)
    tm = (stream_budget // per_tm) // 128 * 128
    m_pad128 = pl.cdiv(M, 128) * 128
    tm_cap = max(128, (m_pad128 // 4) // 128 * 128)
    return int(max(128, min(tm, 1024, tm_cap, m_pad128)))


def ppm_cont_forward(xp, probe_attCS, fl_unit, line_to_elem, SA_theta,
                     sample_size_cm, probe_cts, minibatch_size, sample_size_n):
    """Glue: pad/reshape params, then run the gridded Pallas kernel."""
    E = int(probe_attCS.shape[0])
    L = int(fl_unit.shape[0])
    M = int(minibatch_size)
    N = int(sample_size_n)

    n_pad = pl.cdiv(N, 128) * 128            # lane-dense N
    tri_b = 256 if (n_pad % 256 == 0) else 128
    n_blocks = n_pad // tri_b

    tm = _choose_block_m(E, L, M, n_pad)
    m_pad = pl.cdiv(M, tm) * tm
    grid_m = m_pad // tm

    xp3 = jnp.asarray(xp, jnp.float32).reshape(E, M, N)
    sa3 = jnp.asarray(SA_theta, jnp.float32).reshape(L, M, N)
    # TODO(synk): avoid this materialized pad (extra HBM pass over both large
    # streams) by fusing it into the upstream rotation/interp producer, or by
    # handling the M remainder with a clamped index_map and masking the N tail
    # in-kernel. Also consider bf16 xp/SA streaming on HBM-bound v5e.
    if m_pad != M or n_pad != N:
        xp3 = jnp.pad(xp3, ((0, 0), (0, m_pad - M), (0, n_pad - N)))
        sa3 = jnp.pad(sa3, ((0, 0), (0, m_pad - M), (0, n_pad - N)))

    # Fold the voxel-length scale into the attenuation cross sections (host).
    scale = float(sample_size_cm) / float(N)
    attcs = (jnp.asarray(probe_attCS, jnp.float32) * scale).reshape(E, 1, 1)
    flu = jnp.asarray(fl_unit, jnp.float32).reshape(L, 1)

    # line -> element mapping is static configuration; bake it into the kernel.
    lte = tuple(int(v) for v in np.asarray(line_to_elem))
    assert len(lte) == L and all(0 <= v < E for v in lte)

    # Strictly-upper-triangular block matrix (exclusive cumsum), bf16 is exact
    # for 0/1 and runs at native MXU rate; B x B instead of N x N.
    tri = jnp.triu(jnp.ones((tri_b, tri_b), jnp.float32), k=1).astype(jnp.bfloat16)

    kernel = functools.partial(
        ppm_cont_kernel,
        line_to_elem=lte,
        tri_block=tri_b,
        n_blocks=n_blocks,
        log_probe_cts=float(np.log(float(probe_cts))))

    # VMEM footprint estimate matching the kernel body, clamped per generation.
    cap = _vmem_capacity_bytes()
    vmem_clamp = (104 << 20) if cap >= (112 << 20) else (48 << 20)
    est = (_per_tm_vmem_bytes(E, L, n_pad) * tm     # streams + temporaries
           + 2 * tri_b * tri_b * 2                  # tri (bf16, double-buffered)
           + 2 * (L + 1) * tm * 4                   # output blocks
           + 8 * (E + L) * 4)                       # small constants
    vmem_limit = int(min(max(est + (8 << 20), 32 << 20), vmem_clamp))

    grid_spec = pltpu.PrefetchScalarGridSpec(
        num_scalar_prefetch=0,
        grid=(grid_m,),
        in_specs=[
            pl.BlockSpec((E, 1, 1), lambda i: (0, 0, 0)),       # attCS (scaled), resident
            pl.BlockSpec((L, 1), lambda i: (0, 0)),             # fl_unit, resident
            pl.BlockSpec((tri_b, tri_b), lambda i: (0, 0)),     # tri block, resident
            pl.BlockSpec((E, tm, n_pad), lambda i: (0, i, 0)),  # xp block
            pl.BlockSpec((L, tm, n_pad), lambda i: (0, i, 0)),  # SA block
        ],
        out_specs=(
            pl.BlockSpec((L, tm), lambda i: (0, i)),
            pl.BlockSpec((1, tm), lambda i: (0, i)),
        ),
    )

    out1, out2 = pl.pallas_call(
        kernel,
        out_shape=(jax.ShapeDtypeStruct((L, m_pad), jnp.float32),
                   jax.ShapeDtypeStruct((1, m_pad), jnp.float32)),
        grid_spec=grid_spec,
        compiler_params=pltpu.CompilerParams(
            dimension_semantics=("parallel",),
            vmem_limit_bytes=vmem_limit),
    )(attcs, flu, tri, xp3, sa3)

    return out1[:, :M], out2[0, :M]


def ppm_cont_reference(xp, probe_attCS, fl_unit, n_line_group, SA_theta,
                       sample_size_cm, probe_cts, M, N):
    """Pure-JAX transcription of the PyTorch forward, for verification."""
    E = probe_attCS.shape[0]
    xp3 = xp.reshape(E, M, N)
    scale = sample_size_cm / N
    att_acc = jnp.zeros((M, N + 1), jnp.float32)
    fl_rows = []
    line_idx = 0
    for j in range(E):
        lac = xp3[j] * probe_attCS[j]
        lac_acc = jnp.concatenate([jnp.zeros((M, 1), jnp.float32),
                                   jnp.cumsum(lac, axis=1)], axis=1)
        att_acc = att_acc + lac_acc * scale
        for u in fl_unit[line_idx:line_idx + int(n_line_group[j])]:
            fl_rows.append(xp3[j].reshape(-1) * u)
        line_idx += int(n_line_group[j])
    fl_map = jnp.stack(fl_rows)                                        # (L, M*N)
    atten_flat = jnp.exp(-att_acc[:, :-1]).reshape(-1)
    trans = jnp.exp(-att_acc[:, -1])
    probe_after = probe_cts * atten_flat
    fl_sig = (probe_after[None, :] * fl_map * SA_theta).reshape(-1, M, N).sum(-1)
    return fl_sig, probe_cts * trans


if __name__ == "__main__":
    # Small, module-consistent shapes.
    n_element = 4                       # E
    minibatch_size = 8                  # M
    sample_size_n = 16                  # N
    n_line_group_each_element = np.array([2, 3, 1, 2], dtype=np.int32)
    n_lines = int(n_line_group_each_element.sum())                    # L = 8
    n_voxel_minibatch = minibatch_size * sample_size_n
    sample_size_cm = 0.01
    probe_cts = 10.0
    line_to_elem = np.repeat(np.arange(n_element), n_line_group_each_element)

    key = jax.random.PRNGKey(0)
    k1, k2, k3, k4 = jax.random.split(key, 4)
    # xp: concentration map, flat like self.xp (E * M * N,)
    xp = jax.random.uniform(k1, (n_element * minibatch_size * sample_size_n,),
                            dtype=jnp.float32)
    probe_attCS = jax.random.uniform(k2, (n_element,), dtype=jnp.float32,
                                     minval=0.1, maxval=1.0)
    detected_fl_unit_concentration = jax.random.uniform(
        k3, (n_lines,), dtype=jnp.float32, minval=0.1, maxval=1.0)
    # TODO(synk): SA_theta is derived in __init__ from xraylib-based attenuation and the
    # detector geometry (P_batch); here it is a deterministic synthetic constant.
    SA_theta = jax.random.uniform(k4, (n_lines, n_voxel_minibatch), dtype=jnp.float32,
                                  minval=0.1, maxval=1.0)

    out1, out2 = ppm_cont_forward(xp, probe_attCS, detected_fl_unit_concentration,
                                  line_to_elem, SA_theta,
                                  sample_size_cm, probe_cts,
                                  minibatch_size, sample_size_n)
    out1 = jax.block_until_ready(out1)
    out2 = jax.block_until_ready(out2)

    ref1, ref2 = ppm_cont_reference(xp, probe_attCS, detected_fl_unit_concentration,
                                    n_line_group_each_element, SA_theta,
                                    sample_size_cm, probe_cts,
                                    minibatch_size, sample_size_n)

    assert out1.shape == (n_lines, minibatch_size)
    assert out2.shape == (minibatch_size,)
    # out1 goes through the bf16 MXU exclusive-cumsum path (operand rounding
    # only, accumulation stays f32); out2's exponent is pure f32.
    np.testing.assert_allclose(np.asarray(out1), np.asarray(ref1), rtol=1e-3, atol=1e-6)
    np.testing.assert_allclose(np.asarray(out2), np.asarray(ref2), rtol=1e-5, atol=1e-6)
    print("KERNEL_OK")
</pallas_src>

<mosaic_0001>
module attributes {stable_mosaic.version = 11 : i64} {
  func.func @ppm_cont_kernel(%arg0: i32, %arg1: memref<4x1x1xf32, #tpu.memory_space<vmem>>, %arg2: memref<8x1xf32, #tpu.memory_space<vmem>>, %arg3: memref<128x128xbf16, #tpu.memory_space<vmem>>, %arg4: memref<4x128x128xf32, #tpu.memory_space<vmem>>, %arg5: memref<8x128x128xf32, #tpu.memory_space<vmem>>, %arg6: memref<8x128xf32, #tpu.memory_space<vmem>>, %arg7: memref<1x128xf32, #tpu.memory_space<vmem>>) attributes {dimension_semantics = [#tpu.dimension_semantics<parallel>], iteration_bounds = array<i64: 1>, scalar_prefetch = 0 : i64, scratch_operands = 0 : i64, tpu.core_type = #tpu.core_type<tc>, window_params = [{pipeline_mode = #tpu.pipeline_mode<synchronous>, transform_indices = @transform_0, window_bounds = array<i64: 4, 1, 1>}, {pipeline_mode = #tpu.pipeline_mode<synchronous>, transform_indices = @transform_1, window_bounds = array<i64: 8, 1>}, {pipeline_mode = #tpu.pipeline_mode<synchronous>, transform_indices = @transform_2, window_bounds = array<i64: 128, 128>}, {transform_indices = @transform_3, window_bounds = array<i64: 4, 128, 128>}, {transform_indices = @transform_4, window_bounds = array<i64: 8, 128, 128>}, {transform_indices = @transform_5, window_bounds = array<i64: 8, 128>}, {transform_indices = @transform_6, window_bounds = array<i64: 1, 128>}]} {
    %c0 = arith.constant 0 : index
    %c0_0 = arith.constant 0 : index
    %c0_1 = arith.constant 0 : index
    %0 = vector.load %arg4[%c0, %c0_0, %c0_1] : memref<4x128x128xf32, #tpu.memory_space<vmem>>, vector<1x128x128xf32>
    %1 = vector.shape_cast %0 : vector<1x128x128xf32> to vector<128x128xf32>
    %c0_2 = arith.constant 0 : index
    %c0_3 = arith.constant 0 : index
    %c0_4 = arith.constant 0 : index
    %2 = vector.load %arg1[%c0_2, %c0_3, %c0_4] : memref<4x1x1xf32, #tpu.memory_space<vmem>>, vector<1x1x1xf32>
    %3 = vector.shape_cast %2 : vector<1x1x1xf32> to vector<1x1xf32>
    %4 = vector.broadcast %3 : vector<1x1xf32> to vector<128x128xf32>
    %5 = arith.mulf %1, %4 : vector<128x128xf32>
    %c1 = arith.constant 1 : index
    %c0_5 = arith.constant 0 : index
    %c0_6 = arith.constant 0 : index
    %6 = vector.load %arg4[%c1, %c0_5, %c0_6] : memref<4x128x128xf32, #tpu.memory_space<vmem>>, vector<1x128x128xf32>
    %7 = vector.shape_cast %6 : vector<1x128x128xf32> to vector<128x128xf32>
    %c1_7 = arith.constant 1 : index
    %c0_8 = arith.constant 0 : index
    %c0_9 = arith.constant 0 : index
    %8 = vector.load %arg1[%c1_7, %c0_8, %c0_9] : memref<4x1x1xf32, #tpu.memory_space<vmem>>, vector<1x1x1xf32>
    %9 = vector.shape_cast %8 : vector<1x1x1xf32> to vector<1x1xf32>
    %10 = vector.broadcast %9 : vector<1x1xf32> to vector<128x128xf32>
    %11 = arith.mulf %7, %10 : vector<128x128xf32>
    %12 = arith.addf %5, %11 : vector<128x128xf32>
    %c2 = arith.constant 2 : index
    %c0_10 = arith.constant 0 : index
    %c0_11 = arith.constant 0 : index
    %13 = vector.load %arg4[%c2, %c0_10, %c0_11] : memref<4x128x128xf32, #tpu.memory_space<vmem>>, vector<1x128x128xf32>
    %14 = vector.shape_cast %13 : vector<1x128x128xf32> to vector<128x128xf32>
    %c2_12 = arith.constant 2 : index
    %c0_13 = arith.constant 0 : index
    %c0_14 = arith.constant 0 : index
    %15 = vector.load %arg1[%c2_12, %c0_13, %c0_14] : memref<4x1x1xf32, #tpu.memory_space<vmem>>, vector<1x1x1xf32>
    %16 = vector.shape_cast %15 : vector<1x1x1xf32> to vector<1x1xf32>
    %17 = vector.broadcast %16 : vector<1x1xf32> to vector<128x128xf32>
    %18 = arith.mulf %14, %17 : vector<128x128xf32>
    %19 = arith.addf %12, %18 : vector<128x128xf32>
    %c3 = arith.constant 3 : index
    %c0_15 = arith.constant 0 : index
    %c0_16 = arith.constant 0 : index
    %20 = vector.load %arg4[%c3, %c0_15, %c0_16] : memref<4x128x128xf32, #tpu.memory_space<vmem>>, vector<1x128x128xf32>
    %21 = vector.shape_cast %20 : vector<1x128x128xf32> to vector<128x128xf32>
    %c3_17 = arith.constant 3 : index
    %c0_18 = arith.constant 0 : index
    %c0_19 = arith.constant 0 : index
    %22 = vector.load %arg1[%c3_17, %c0_18, %c0_19] : memref<4x1x1xf32, #tpu.memory_space<vmem>>, vector<1x1x1xf32>
    %23 = vector.shape_cast %22 : vector<1x1x1xf32> to vector<1x1xf32>
    %24 = vector.broadcast %23 : vector<1x1xf32> to vector<128x128xf32>
    %25 = arith.mulf %21, %24 : vector<128x128xf32>
    %26 = arith.addf %19, %25 : vector<128x128xf32>
    %c0_20 = arith.constant 0 : index
    %c0_21 = arith.constant 0 : index
    %27 = vector.load %arg3[%c0_20, %c0_21] : memref<128x128xbf16, #tpu.memory_space<vmem>>, vector<128x128xbf16>
    %28 = arith.truncf %26 : vector<128x128xf32> to vector<128x128xbf16>
    %cst = arith.constant dense<0.000000e+00> : vector<128x128xf32>
    %29 = tpu.matmul %28, %27, %cst {dimension_numbers = #tpu.dot_dimension_numbers<[1], [0], [0], [1], [0, 0, 1, 1], [], []>} : vector<128x128xbf16>, vector<128x128xbf16>, vector<128x128xf32> -> vector<128x128xf32>
    %cst_22 = arith.constant dense<0.000000e+00> : vector<128xf32>
    %30 = vector.multi_reduction <add>, %26, %cst_22 [1] : vector<128x128xf32> to vector<128xf32>
    %31 = vector.shape_cast %30 : vector<128xf32> to vector<128x1xf32>
    %cst_23 = arith.constant 2.30258512 : f32
    %32 = vector.broadcast %cst_23 : f32 to vector<128x128xf32>
    %33 = arith.subf %32, %29 : vector<128x128xf32>
    %34 = math.exp %33 : vector<128x128xf32>
    %35 = vector.shape_cast %31 : vector<128x1xf32> to vector<128xf32>
    %cst_24 = arith.constant 2.30258512 : f32
    %36 = vector.broadcast %cst_24 : f32 to vector<128xf32>
    %37 = arith.subf %36, %35 : vector<128xf32>
    %38 = math.exp %37 : vector<128xf32>
    %c0_25 = arith.constant 0 : index
    %c0_26 = arith.constant 0 : index
    %39 = vector.load %arg7[%c0_25, %c0_26] : memref<1x128xf32, #tpu.memory_space<vmem>>, vector<1x128xf32>
    %40 = vector.shape_cast %39 : vector<1x128xf32> to vector<128xf32>
    %41 = vector.shape_cast %38 : vector<128xf32> to vector<1x128xf32>
    tpu.vector_store %arg7[%c0_25, %c0_26], %41 {strides = array<i32>} : memref<1x128xf32, #tpu.memory_space<vmem>>, vector<1x128xf32>,
    %c0_27 = arith.constant 0 : index
    %c0_28 = arith.constant 0 : index
    %c0_29 = arith.constant 0 : index
    %42 = vector.load %arg4[%c0_27, %c0_28, %c0_29] : memref<4x128x128xf32, #tpu.memory_space<vmem>>, vector<1x128x128xf32>
    %43 = vector.shape_cast %42 : vector<1x128x128xf32> to vector<128x128xf32>
    %44 = arith.mulf %34, %43 : vector<128x128xf32>
    %c0_30 = arith.constant 0 : index
    %c0_31 = arith.constant 0 : index
    %c0_32 = arith.constant 0 : index
    %45 = vector.load %arg5[%c0_30, %c0_31, %c0_32] : memref<8x128x128xf32, #tpu.memory_space<vmem>>, vector<1x128x128xf32>
    %46 = vector.shape_cast %45 : vector<1x128x128xf32> to vector<128x128xf32>
    %47 = arith.mulf %44, %46 : vector<128x128xf32>
    %cst_33 = arith.constant dense<0.000000e+00> : vector<128xf32>
    %48 = vector.multi_reduction <add>, %47, %cst_33 [1] : vector<128x128xf32> to vector<128xf32>
    %c1_34 = arith.constant 1 : index
    %c0_35 = arith.constant 0 : index
    %c0_36 = arith.constant 0 : index
    %49 = vector.load %arg5[%c1_34, %c0_35, %c0_36] : memref<8x128x128xf32, #tpu.memory_space<vmem>>, vector<1x128x128xf32>
    %50 = vector.shape_cast %49 : vector<1x128x128xf32> to vector<128x128xf32>
    %51 = arith.mulf %44, %50 : vector<128x128xf32>
    %cst_37 = arith.constant dense<0.000000e+00> : vector<128xf32>
    %52 = vector.multi_reduction <add>, %51, %cst_37 [1] : vector<128x128xf32> to vector<128xf32>
    %c1_38 = arith.constant 1 : index
    %c0_39 = arith.constant 0 : index
    %c0_40 = arith.constant 0 : index
    %53 = vector.load %arg4[%c1_38, %c0_39, %c0_40] : memref<4x128x128xf32, #tpu.memory_space<vmem>>, vector<1x128x128xf32>
    %54 = vector.shape_cast %53 : vector<1x128x128xf32> to vector<128x128xf32>
    %55 = arith.mulf %34, %54 : vector<128x128xf32>
    %c2_41 = arith.constant 2 : index
    %c0_42 = arith.constant 0 : index
    %c0_43 = arith.constant 0 : index
    %56 = vector.load %arg5[%c2_41, %c0_42, %c0_43] : memref<8x128x128xf32, #tpu.memory_space<vmem>>, vector<1x128x128xf32>
    %57 = vector.shape_cast %56 : vector<1x128x128xf32> to vector<128x128xf32>
    %58 = arith.mulf %55, %57 : vector<128x128xf32>
    %cst_44 = arith.constant dense<0.000000e+00> : vector<128xf32>
    %59 = vector.multi_reduction <add>, %58, %cst_44 [1] : vector<128x128xf32> to vector<128xf32>
    %c3_45 = arith.constant 3 : index
    %c0_46 = arith.constant 0 : index
    %c0_47 = arith.constant 0 : index
    %60 = vector.load %arg5[%c3_45, %c0_46, %c0_47] : memref<8x128x128xf32, #tpu.memory_space<vmem>>, vector<1x128x128xf32>
    %61 = vector.shape_cast %60 : vector<1x128x128xf32> to vector<128x128xf32>
    %62 = arith.mulf %55, %61 : vector<128x128xf32>
    %cst_48 = arith.constant dense<0.000000e+00> : vector<128xf32>
    %63 = vector.multi_reduction <add>, %62, %cst_48 [1] : vector<128x128xf32> to vector<128xf32>
    %c4 = arith.constant 4 : index
    %c0_49 = arith.constant 0 : index
    %c0_50 = arith.constant 0 : index
    %64 = vector.load %arg5[%c4, %c0_49, %c0_50] : memref<8x128x128xf32, #tpu.memory_space<vmem>>, vector<1x128x128xf32>
    %65 = vector.shape_cast %64 : vector<1x128x128xf32> to vector<128x128xf32>
    %66 = arith.mulf %55, %65 : vector<128x128xf32>
    %cst_51 = arith.constant dense<0.000000e+00> : vector<128xf32>
    %67 = vector.multi_reduction <add>, %66, %cst_51 [1] : vector<128x128xf32> to vector<128xf32>
    %c2_52 = arith.constant 2 : index
    %c0_53 = arith.constant 0 : index
    %c0_54 = arith.constant 0 : index
    %68 = vector.load %arg4[%c2_52, %c0_53, %c0_54] : memref<4x128x128xf32, #tpu.memory_space<vmem>>, vector<1x128x128xf32>
    %69 = vector.shape_cast %68 : vector<1x128x128xf32> to vector<128x128xf32>
    %70 = arith.mulf %34, %69 : vector<128x128xf32>
    %c5 = arith.constant 5 : index
    %c0_55 = arith.constant 0 : index
    %c0_56 = arith.constant 0 : index
    %71 = vector.load %arg5[%c5, %c0_55, %c0_56] : memref<8x128x128xf32, #tpu.memory_space<vmem>>, vector<1x128x128xf32>
    %72 = vector.shape_cast %71 : vector<1x128x128xf32> to vector<128x128xf32>
    %73 = arith.mulf %70, %72 : vector<128x128xf32>
    %cst_57 = arith.constant dense<0.000000e+00> : vector<128xf32>
    %74 = vector.multi_reduction <add>, %73, %cst_57 [1] : vector<128x128xf32> to vector<128xf32>
    %c3_58 = arith.constant 3 : index
    %c0_59 = arith.constant 0 : index
    %c0_60 = arith.constant 0 : index
    %75 = vector.load %arg4[%c3_58, %c0_59, %c0_60] : memref<4x128x128xf32, #tpu.memory_space<vmem>>, vector<1x128x128xf32>
    %76 = vector.shape_cast %75 : vector<1x128x128xf32> to vector<128x128xf32>
    %77 = arith.mulf %34, %76 : vector<128x128xf32>
    %c6 = arith.constant 6 : index
    %c0_61 = arith.constant 0 : index
    %c0_62 = arith.constant 0 : index
    %78 = vector.load %arg5[%c6, %c0_61, %c0_62] : memref<8x128x128xf32, #tpu.memory_space<vmem>>, vector<1x128x128xf32>
    %79 = vector.shape_cast %78 : vector<1x128x128xf32> to vector<128x128xf32>
    %80 = arith.mulf %77, %79 : vector<128x128xf32>
    %cst_63 = arith.constant dense<0.000000e+00> : vector<128xf32>
    %81 = vector.multi_reduction <add>, %80, %cst_63 [1] : vector<128x128xf32> to vector<128xf32>
    %c7 = arith.constant 7 : index
    %c0_64 = arith.constant 0 : index
    %c0_65 = arith.constant 0 : index
    %82 = vector.load %arg5[%c7, %c0_64, %c0_65] : memref<8x128x128xf32, #tpu.memory_space<vmem>>, vector<1x128x128xf32>
    %83 = vector.shape_cast %82 : vector<1x128x128xf32> to vector<128x128xf32>
    %84 = arith.mulf %77, %83 : vector<128x128xf32>
    %cst_66 = arith.constant dense<0.000000e+00> : vector<128xf32>
    %85 = vector.multi_reduction <add>, %84, %cst_66 [1] : vector<128x128xf32> to vector<128xf32>
    %c0_67 = arith.constant 0 : index
    %c0_68 = arith.constant 0 : index
    %86 = vector.load %arg2[%c0_67, %c0_68] : memref<8x1xf32, #tpu.memory_space<vmem>>, vector<8x1xf32>
    %87 = vector.shape_cast %48 : vector<128xf32> to vector<1x128xf32>
    %88 = vector.shape_cast %52 : vector<128xf32> to vector<1x128xf32>
    %89 = vector.shape_cast %59 : vector<128xf32> to vector<1x128xf32>
    %90 = vector.shape_cast %63 : vector<128xf32> to vector<1x128xf32>
    %91 = vector.shape_cast %67 : vector<128xf32> to vector<1x128xf32>
    %92 = vector.shape_cast %74 : vector<128xf32> to vector<1x128xf32>
    %93 = vector.shape_cast %81 : vector<128xf32> to vector<1x128xf32>
    %94 = vector.shape_cast %85 : vector<128xf32> to vector<1x128xf32>
    %95 = tpu.concatenate %87, %88, %89, %90, %91, %92, %93, %94 in 0 : vector<1x128xf32>, vector<1x128xf32>, vector<1x128xf32>, vector<1x128xf32>, vector<1x128xf32>, vector<1x128xf32>, vector<1x128xf32>, vector<1x128xf32> -> vector<8x128xf32>
    %96 = vector.broadcast %86 : vector<8x1xf32> to vector<8x128xf32>
    %97 = arith.mulf %96, %95 : vector<8x128xf32>
    %c0_69 = arith.constant 0 : index
    %c0_70 = arith.constant 0 : index
    %98 = vector.load %arg6[%c0_69, %c0_70] : memref<8x128xf32, #tpu.memory_space<vmem>>, vector<8x128xf32>
    tpu.vector_store %arg6[%c0_69, %c0_70], %97 {strides = array<i32>} : memref<8x128xf32, #tpu.memory_space<vmem>>, vector<8x128xf32>,
    return
  }
  func.func @transform_0(%arg0: i32) -> (i32, i32, i32) {
    %c0_i32 = arith.constant 0 : i32
    %c0_i32_0 = arith.constant 0 : i32
    %c0_i32_1 = arith.constant 0 : i32
    %c0_i32_2 = arith.constant 0 : i32
    return %c0_i32, %c0_i32_0, %c0_i32_1 : i32, i32, i32
  }
  func.func @transform_1(%arg0: i32) -> (i32, i32) {
    %c0_i32 = arith.constant 0 : i32
    %c0_i32_0 = arith.constant 0 : i32
    %c0_i32_1 = arith.constant 0 : i32
    return %c0_i32, %c0_i32_0 : i32, i32
  }
  func.func @transform_2(%arg0: i32) -> (i32, i32) {
    %c0_i32 = arith.constant 0 : i32
    %c0_i32_0 = arith.constant 0 : i32
    %c0_i32_1 = arith.constant 0 : i32
    return %c0_i32, %c0_i32_0 : i32, i32
  }
  func.func @transform_3(%arg0: i32) -> (i32, i32, i32) {
    %c0_i32 = arith.constant 0 : i32
    %c0_i32_0 = arith.constant 0 : i32
    %c0_i32_1 = arith.constant 0 : i32
    return %c0_i32, %arg0, %c0_i32_0 : i32, i32, i32
  }
  func.func @transform_4(%arg0: i32) -> (i32, i32, i32) {
    %c0_i32 = arith.constant 0 : i32
    %c0_i32_0 = arith.constant 0 : i32
    %c0_i32_1 = arith.constant 0 : i32
    return %c0_i32, %arg0, %c0_i32_0 : i32, i32, i32
  }
  func.func @transform_5(%arg0: i32) -> (i32, i32) {
    %c0_i32 = arith.constant 0 : i32
    %c0_i32_0 = arith.constant 0 : i32
    return %c0_i32, %arg0 : i32, i32
  }
  func.func @transform_6(%arg0: i32) -> (i32, i32) {
    %c0_i32 = arith.constant 0 : i32
    %c0_i32_0 = arith.constant 0 : i32
    return %c0_i32, %arg0 : i32, i32
  }
}

</mosaic_0001>

<llo_original>
// kernel: tpu_custom_call.1
$region0: #{tpu_custom_call.1}
  #allocation0 [shape = 'u32[]', space=smem, size = 0x4, offset = 0x4, fixed_abs, tag = 'smem constant byte address 0x4 - core index']
  #allocation1 [shape = 'u32[144,128]{1,0:T(1,128)}', space=vmem, size = 0x12000, scoped, tag = 'internal scratch']
  %s0 = inlined_call_operand.vmem [shape: f32[4,1,1], index: 0, kind: input, shape index: {}]
  %s1 = inlined_call_operand.vmem [shape: f32[8,1], index: 1, kind: input, shape index: {}]
  %s2 = inlined_call_operand.hbm [shape: bf16[128,128], index: 2, kind: input, shape index: {}]
  %s3 = inlined_call_operand.hbm [shape: f32[4,128,128], index: 3, kind: input, shape index: {}]
  %s4 = inlined_call_operand.hbm [shape: f32[8,128,128], index: 4, kind: input, shape index: {}]
  %s5 = inlined_call_operand.hbm [shape: f32[8,128], index: 5, kind: output, shape index: {0}]
  %s6 = inlined_call_operand.hbm [shape: f32[1,128], index: 6, kind: output, shape index: {1}]
  %7 = xla_tuple %s5, %s6
  %s8 = sld [smem:[#allocation0]]
  $region50: #{tpu_custom_call.1} parent=0
    _
  %s10 = ssub.s32 1, %s8
  %s11 = scalar_select 0, %s10, %s8
  $region1: #{tpu_custom_call.1} parent=0
    #allocation2 [shape = 'u8[32768]{0}', space=vmem, size = 0x8000, scoped, tag = 'input window, operand 2, single buffered']
    #allocation3 [shape = 's32[1]{0}', space=sflag, size = 0x4, scoped, tag = 'scoped memory for tpu_custom_call.1']
    #allocation4 [shape = 's32[1]{0}', space=sflag, size = 0x4, scoped, tag = 'scoped memory for tpu_custom_call.1']
    #allocation5 [shape = 'u8[262144]{0}', space=vmem, size = 0x40000, scoped, tag = 'input window, operand 3, single buffered']
    #allocation6 [shape = 's32[1]{0}', space=sflag, size = 0x4, scoped, tag = 'scoped memory for tpu_custom_call.1']
    #allocation7 [shape = 'u8[524288]{0}', space=vmem, size = 0x80000, scoped, tag = 'input window, operand 4, single buffered']
    #allocation8 [shape = 'u8[4096]{0}', space=vmem, size = 0x1000, scoped, tag = 'output window, operand 0, single buffered']
    #allocation9 [shape = 'u8[512]{0}', space=vmem, size = 0x400, scoped, tag = 'output window, operand 1, single buffered']
    #allocation10 [shape = 's32[1]{0}', space=sflag, size = 0x4, scoped, tag = 'scoped memory for tpu_custom_call.1']
    %12 = vsyncpa [#allocation3], 0
    %13 = vsyncpa [#allocation6], 0
    %14 = vsyncpa [#allocation4], 0
    %15 = vsyncpa [#allocation10], 0
    // Predicated region
    $region2: #{tpu_custom_call.1} parent=1 // pred_check
      _
    $region3: #{tpu_custom_call.1} parent=1 // pred_check_branch
      %17 = sbr.rel (0) target = $region5
    $region4: #{tpu_custom_call.1} parent=1 // pred_region
      _
    $region5: #{tpu_custom_call.1} parent=1 // pred_fallthru
      _
    // Predicated region
    $region6: #{tpu_custom_call.1} parent=1 // pred_check
      _
    $region7: #{tpu_custom_call.1} parent=1 // pred_check_branch
      %19 = sbr.rel (0) target = $region9
    $region8: #{tpu_custom_call.1} parent=1 // pred_region
      _
    $region9: #{tpu_custom_call.1} parent=1 // pred_fallthru
      _
    // Predicated region
    $region10: #{tpu_custom_call.1} parent=1 // pred_check
      _
    $region11: #{tpu_custom_call.1} parent=1 // pred_check_branch
      %21 = sbr.rel (0) target = $region13
    $region12: #{tpu_custom_call.1} parent=1 // pred_region
      %s23 = ssub.s32 1024, 1024
      %24 = vsyncadd [#allocation3], %s23
      %s25 = sshll.u32 [#allocation2], 4
      %s26 = int_to_ptr.vmem [resolvable:$true] %s25
      %31 = dma.hbm_to_vmem [thread:$0]  %s2, 1024, %s26, [#allocation3], 64, 64, 4
    $region13: #{tpu_custom_call.1} parent=1 // pred_fallthru
      _
    // Predicated region
    $region14: #{tpu_custom_call.1} parent=1 // pred_check
      _
    $region15: #{tpu_custom_call.1} parent=1 // pred_check_branch
      %33 = sbr.rel (0) target = $region17
    $region16: #{tpu_custom_call.1} parent=1 // pred_region
      %s35 = ssub.s32 8192, 8192
      %36 = vsyncadd [#allocation6], %s35
      %s37 = sshll.u32 [#allocation5], 4
      %s38 = int_to_ptr.vmem [resolvable:$true] %s37
      %43 = dma.hbm_to_vmem [thread:$0]  %s3, 8192, %s38, [#allocation6], 128, 128, 8
    $region17: #{tpu_custom_call.1} parent=1 // pred_fallthru
      _
    // Predicated region
    $region18: #{tpu_custom_call.1} parent=1 // pred_check
      _
    $region19: #{tpu_custom_call.1} parent=1 // pred_check_branch
      %45 = sbr.rel (0) target = $region21
    $region20: #{tpu_custom_call.1} parent=1 // pred_region
      %s47 = ssub.s32 16384, 16384
      %48 = vsyncadd [#allocation6], %s47
      %s49 = sshll.u32 [#allocation7], 4
      %s50 = int_to_ptr.vmem [resolvable:$true] %s49
      %55 = dma.hbm_to_vmem [thread:$0]  %s4, 16384, %s50, [#allocation6], 128, 128, 8
    $region21: #{tpu_custom_call.1} parent=1 // pred_fallthru
      _
    // Predicated region
    $region22: #{tpu_custom_call.1} parent=1 // pred_check
      _
    $region23: #{tpu_custom_call.1} parent=1 // pred_check_branch
      %57 = sbr.rel (0) target = $region25
    $region24: #{tpu_custom_call.1} parent=1 // pred_region
      %58 = dma.done [#allocation3], 1024
    $region25: #{tpu_custom_call.1} parent=1 // pred_fallthru
      _
    // Predicated region
    $region26: #{tpu_custom_call.1} parent=1 // pred_check
      _
    $region27: #{tpu_custom_call.1} parent=1 // pred_check_branch
      %60 = sbr.rel (0) target = $region29
    $region28: #{tpu_custom_call.1} parent=1 // pred_region
      %61 = dma.done [#allocation6], 8192
    $region29: #{tpu_custom_call.1} parent=1 // pred_fallthru
      _
    // Predicated region
    $region30: #{tpu_custom_call.1} parent=1 // pred_check
      _
    $region31: #{tpu_custom_call.1} parent=1 // pred_check_branch
      %63 = sbr.rel (0) target = $region33
    $region32: #{tpu_custom_call.1} parent=1 // pred_region
      %64 = dma.done [#allocation6], 16384
    $region33: #{tpu_custom_call.1} parent=1 // pred_fallthru
      _
    %v66 = vld [vmem:[#allocation5] sm:$0xff]
    %v67 = vld [vmem:[#allocation5 + $0x8] sm:$0xff]
    %v68 = vld [vmem:[#allocation5 + $0x10] sm:$0xff]
    %v69 = vld [vmem:[#allocation5 + $0x18] sm:$0xff]
    %v70 = vld [vmem:[#allocation5 + $0x20] sm:$0xff]
    %v71 = vld [vmem:[#allocation5 + $0x28] sm:$0xff]
    %v72 = vld [vmem:[#allocation5 + $0x30] sm:$0xff]
    %v73 = vld [vmem:[#allocation5 + $0x38] sm:$0xff]
    %v74 = vld [vmem:[#allocation5 + $0x40] sm:$0xff]
    %v75 = vld [vmem:[#allocation5 + $0x48] sm:$0xff]
    %v76 = vld [vmem:[#allocation5 + $0x50] sm:$0xff]
    %v77 = vld [vmem:[#allocation5 + $0x58] sm:$0xff]
    %v78 = vld [vmem:[#allocation5 + $0x60] sm:$0xff]
    %v79 = vld [vmem:[#allocation5 + $0x68] sm:$0xff]
    %v80 = vld [vmem:[#allocation5 + $0x70] sm:$0xff]
    %v81 = vld [vmem:[#allocation5 + $0x78] sm:$0xff]
    %v82 = vld [vmem:[%s0] sm:$0x1]
    %v84 = vlaneseq
    %v85 = vshrl.u32 %v84, 7
    %v86 = vsub.s32 0, %v85
    %v87 = vrot.slane %v82, %v86
    %88 = vset.pattern.permute.xlu0 0
    %89 = vperm.xlu0 %88, %v87
    %v90 = vpop.permute.xlu0 %89
    %v92 = vmul.f32 %v66, %v90
    %v93 = vmul.f32 %v67, %v90
    %v94 = vmul.f32 %v68, %v90
    %v95 = vmul.f32 %v69, %v90
    %v96 = vmul.f32 %v70, %v90
    %v97 = vmul.f32 %v71, %v90
    %v98 = vmul.f32 %v72, %v90
    %v99 = vmul.f32 %v73, %v90
    %v100 = vmul.f32 %v74, %v90
    %v101 = vmul.f32 %v75, %v90
    %v102 = vmul.f32 %v76, %v90
    %v103 = vmul.f32 %v77, %v90
    %v104 = vmul.f32 %v78, %v90
    %v105 = vmul.f32 %v79, %v90
    %v106 = vmul.f32 %v80, %v90
    %v107 = vmul.f32 %v81, %v90
    %s108 = scalar_lea.vmem [#allocation5], 128
    %v109 = vld [vmem:[%s108] sm:$0xff]
    %v110 = vld [vmem:[%s108 + $0x8] sm:$0xff]
    %v111 = vld [vmem:[%s108 + $0x10] sm:$0xff]
    %v112 = vld [vmem:[%s108 + $0x18] sm:$0xff]
    %v113 = vld [vmem:[%s108 + $0x20] sm:$0xff]
    %v114 = vld [vmem:[%s108 + $0x28] sm:$0xff]
    %v115 = vld [vmem:[%s108 + $0x30] sm:$0xff]
    %v116 = vld [vmem:[%s108 + $0x38] sm:$0xff]
    %v117 = vld [vmem:[%s108 + $0x40] sm:$0xff]
    %v118 = vld [vmem:[%s108 + $0x48] sm:$0xff]
    %v119 = vld [vmem:[%s108 + $0x50] sm:$0xff]
    %v120 = vld [vmem:[%s108 + $0x58] sm:$0xff]
    %v121 = vld [vmem:[%s108 + $0x60] sm:$0xff]
    %v122 = vld [vmem:[%s108 + $0x68] sm:$0xff]
    %v123 = vld [vmem:[%s108 + $0x70] sm:$0xff]
    %v124 = vld [vmem:[%s108 + $0x78] sm:$0xff]
    %s125 = scalar_lea.vmem %s0, 1
    %v126 = vld [vmem:[%s125] sm:$0x1]
    %v128 = vlaneseq
    %v129 = vshrl.u32 %v128, 7
    %v130 = vsub.s32 0, %v129
    %v131 = vrot.slane %v126, %v130
    %132 = vset.pattern.permute.xlu0 0
    %133 = vperm.xlu0 %132, %v131
    %v134 = vpop.permute.xlu0 %133
    %v136 = vmul.f32 %v109, %v134
    %v137 = vmul.f32 %v110, %v134
    %v138 = vmul.f32 %v111, %v134
    %v139 = vmul.f32 %v112, %v134
    %v140 = vmul.f32 %v113, %v134
    %v141 = vmul.f32 %v114, %v134
    %v142 = vmul.f32 %v115, %v134
    %v143 = vmul.f32 %v116, %v134
    %v144 = vmul.f32 %v117, %v134
    %v145 = vmul.f32 %v118, %v134
    %v146 = vmul.f32 %v119, %v134
    %v147 = vmul.f32 %v120, %v134
    %v148 = vmul.f32 %v121, %v134
    %v149 = vmul.f32 %v122, %v134
    %v150 = vmul.f32 %v123, %v134
    %v151 = vmul.f32 %v124, %v134
    %v152 = vadd.f32 %v92, %v136
    %v153 = vadd.f32 %v93, %v137
    %v154 = vadd.f32 %v94, %v138
    %v155 = vadd.f32 %v95, %v139
    %v156 = vadd.f32 %v96, %v140
    %v157 = vadd.f32 %v97, %v141
    %v158 = vadd.f32 %v98, %v142
    %v159 = vadd.f32 %v99, %v143
    %v160 = vadd.f32 %v100, %v144
    %v161 = vadd.f32 %v101, %v145
    %v162 = vadd.f32 %v102, %v146
    %v163 = vadd.f32 %v103, %v147
    %v164 = vadd.f32 %v104, %v148
    %v165 = vadd.f32 %v105, %v149
    %v166 = vadd.f32 %v106, %v150
    %v167 = vadd.f32 %v107, %v151
    %s168 = scalar_lea.vmem [#allocation5], 256
    %v169 = vld [vmem:[%s168] sm:$0xff]
    %v170 = vld [vmem:[%s168 + $0x8] sm:$0xff]
    %v171 = vld [vmem:[%s168 + $0x10] sm:$0xff]
    %v172 = vld [vmem:[%s168 + $0x18] sm:$0xff]
    %v173 = vld [vmem:[%s168 + $0x20] sm:$0xff]
    %v174 = vld [vmem:[%s168 + $0x28] sm:$0xff]
    %v175 = vld [vmem:[%s168 + $0x30] sm:$0xff]
    %v176 = vld [vmem:[%s168 + $0x38] sm:$0xff]
    %v177 = vld [vmem:[%s168 + $0x40] sm:$0xff]
    %v178 = vld [vmem:[%s168 + $0x48] sm:$0xff]
    %v179 = vld [vmem:[%s168 + $0x50] sm:$0xff]
    %v180 = vld [vmem:[%s168 + $0x58] sm:$0xff]
    %v181 = vld [vmem:[%s168 + $0x60] sm:$0xff]
    %v182 = vld [vmem:[%s168 + $0x68] sm:$0xff]
    %v183 = vld [vmem:[%s168 + $0x70] sm:$0xff]
    %v184 = vld [vmem:[%s168 + $0x78] sm:$0xff]
    %s185 = scalar_lea.vmem %s0, 2
    %v186 = vld [vmem:[%s185] sm:$0x1]
    %v188 = vlaneseq
    %v189 = vshrl.u32 %v188, 7
    %v190 = vsub.s32 0, %v189
    %v191 = vrot.slane %v186, %v190
    %192 = vset.pattern.permute.xlu0 0
    %193 = vperm.xlu0 %192, %v191
    %v194 = vpop.permute.xlu0 %193
    %v196 = vmul.f32 %v169, %v194
    %v197 = vmul.f32 %v170, %v194
    %v198 = vmul.f32 %v171, %v194
    %v199 = vmul.f32 %v172, %v194
    %v200 = vmul.f32 %v173, %v194
    %v201 = vmul.f32 %v174, %v194
    %v202 = vmul.f32 %v175, %v194
    %v203 = vmul.f32 %v176, %v194
    %v204 = vmul.f32 %v177, %v194
    %v205 = vmul.f32 %v178, %v194
    %v206 = vmul.f32 %v179, %v194
    %v207 = vmul.f32 %v180, %v194
    %v208 = vmul.f32 %v181, %v194
    %v209 = vmul.f32 %v182, %v194
    %v210 = vmul.f32 %v183, %v194
    %v211 = vmul.f32 %v184, %v194
    %v212 = vadd.f32 %v152, %v196
    %v213 = vadd.f32 %v153, %v197
    %v214 = vadd.f32 %v154, %v198
    %v215 = vadd.f32 %v155, %v199
    %v216 = vadd.f32 %v156, %v200
    %v217 = vadd.f32 %v157, %v201
    %v218 = vadd.f32 %v158, %v202
    %v219 = vadd.f32 %v159, %v203
    %v220 = vadd.f32 %v160, %v204
    %v221 = vadd.f32 %v161, %v205
    %v222 = vadd.f32 %v162, %v206
    %v223 = vadd.f32 %v163, %v207
    %v224 = vadd.f32 %v164, %v208
    %v225 = vadd.f32 %v165, %v209
    %v226 = vadd.f32 %v166, %v210
    %v227 = vadd.f32 %v167, %v211
    %s228 = scalar_lea.vmem [#allocation5], 384
    %v229 = vld [vmem:[%s228] sm:$0xff]
    %v230 = vld [vmem:[%s228 + $0x8] sm:$0xff]
    %v231 = vld [vmem:[%s228 + $0x10] sm:$0xff]
    %v232 = vld [vmem:[%s228 + $0x18] sm:$0xff]
    %v233 = vld [vmem:[%s228 + $0x20] sm:$0xff]
    %v234 = vld [vmem:[%s228 + $0x28] sm:$0xff]
    %v235 = vld [vmem:[%s228 + $0x30] sm:$0xff]
    %v236 = vld [vmem:[%s228 + $0x38] sm:$0xff]
    %v237 = vld [vmem:[%s228 + $0x40] sm:$0xff]
    %v238 = vld [vmem:[%s228 + $0x48] sm:$0xff]
    %v239 = vld [vmem:[%s228 + $0x50] sm:$0xff]
    %v240 = vld [vmem:[%s228 + $0x58] sm:$0xff]
    %v241 = vld [vmem:[%s228 + $0x60] sm:$0xff]
    %v242 = vld [vmem:[%s228 + $0x68] sm:$0xff]
    %v243 = vld [vmem:[%s228 + $0x70] sm:$0xff]
    %v244 = vld [vmem:[%s228 + $0x78] sm:$0xff]
    %s245 = scalar_lea.vmem %s0, 3
    %v246 = vld [vmem:[%s245] sm:$0x1]
    %v248 = vlaneseq
    %v249 = vshrl.u32 %v248, 7
    %v250 = vsub.s32 0, %v249
    %v251 = vrot.slane %v246, %v250
    %252 = vset.pattern.permute.xlu0 0
    %253 = vperm.xlu0 %252, %v251
    %v254 = vpop.permute.xlu0 %253
    %v256 = vmul.f32 %v229, %v254
    %v257 = vmul.f32 %v230, %v254
    %v258 = vmul.f32 %v231, %v254
    %v259 = vmul.f32 %v232, %v254
    %v260 = vmul.f32 %v233, %v254
    %v261 = vmul.f32 %v234, %v254
    %v262 = vmul.f32 %v235, %v254
    %v263 = vmul.f32 %v236, %v254
    %v264 = vmul.f32 %v237, %v254
    %v265 = vmul.f32 %v238, %v254
    %v266 = vmul.f32 %v239, %v254
    %v267 = vmul.f32 %v240, %v254
    %v268 = vmul.f32 %v241, %v254
    %v269 = vmul.f32 %v242, %v254
    %v270 = vmul.f32 %v243, %v254
    %v271 = vmul.f32 %v244, %v254
    %v272 = vadd.f32 %v212, %v256
    %v273 = vadd.f32 %v213, %v257
    %v274 = vadd.f32 %v214, %v258
    %v275 = vadd.f32 %v215, %v259
    %v276 = vadd.f32 %v216, %v260
    %v277 = vadd.f32 %v217, %v261
    %v278 = vadd.f32 %v218, %v262
    %v279 = vadd.f32 %v219, %v263
    %v280 = vadd.f32 %v220, %v264
    %v281 = vadd.f32 %v221, %v265
    %v282 = vadd.f32 %v222, %v266
    %v283 = vadd.f32 %v223, %v267
    %v284 = vadd.f32 %v224, %v268
    %v285 = vadd.f32 %v225, %v269
    %v286 = vadd.f32 %v226, %v270
    %v287 = vadd.f32 %v227, %v271
    %v288 = vld [vmem:[#allocation2] sm:$0xf]
    %v289 = vld [vmem:[#allocation2 + $0x4] sm:$0xf]
    %v290 = vld [vmem:[#allocation2 + $0x8] sm:$0xf]
    %v291 = vld [vmem:[#allocation2 + $0xc] sm:$0xf]
    %v292 = vld [vmem:[#allocation2 + $0x10] sm:$0xf]
    %v293 = vld [vmem:[#allocation2 + $0x14] sm:$0xf]
    %v294 = vld [vmem:[#allocation2 + $0x18] sm:$0xf]
    %v295 = vld [vmem:[#allocation2 + $0x1c] sm:$0xf]
    %v296 = vld [vmem:[#allocation2 + $0x20] sm:$0xf]
    %v297 = vld [vmem:[#allocation2 + $0x24] sm:$0xf]
    %v298 = vld [vmem:[#allocation2 + $0x28] sm:$0xf]
    %v299 = vld [vmem:[#allocation2 + $0x2c] sm:$0xf]
    %v300 = vld [vmem:[#allocation2 + $0x30] sm:$0xf]
    %v301 = vld [vmem:[#allocation2 + $0x34] sm:$0xf]
    %v302 = vld [vmem:[#allocation2 + $0x38] sm:$0xf]
    %v303 = vld [vmem:[#allocation2 + $0x3c] sm:$0xf]
    %v304 = vpack.c.bf16 %v273, %v272
    %v305 = vpack.c.bf16 %v275, %v274
    %v306 = vpack.c.bf16 %v277, %v276
    %v307 = vpack.c.bf16 %v279, %v278
    %v308 = vpack.c.bf16 %v281, %v280
    %v309 = vpack.c.bf16 %v283, %v282
    %v310 = vpack.c.bf16 %v285, %v284
    %v311 = vpack.c.bf16 %v287, %v286
    %v328 = vunpack.c.l.b16 %v288
    %v329 = vunpack.c.l.b16 %v289
    %v330 = vunpack.c.l.b16 %v290
    %v331 = vunpack.c.l.b16 %v291
    %v332 = vunpack.c.l.b16 %v292
    %v333 = vunpack.c.l.b16 %v293
    %v334 = vunpack.c.l.b16 %v294
    %v335 = vunpack.c.l.b16 %v295
    %v336 = vunpack.c.l.b16 %v296
    %v337 = vunpack.c.l.b16 %v297
    %v338 = vunpack.c.l.b16 %v298
    %v339 = vunpack.c.l.b16 %v299
    %v340 = vunpack.c.l.b16 %v300
    %v341 = vunpack.c.l.b16 %v301
    %v342 = vunpack.c.l.b16 %v302
    %v343 = vunpack.c.l.b16 %v303
    %v344 = vpack.c.b16 %v329, %v328
    %v345 = vpack.c.b16 %v331, %v330
    %v346 = vpack.c.b16 %v333, %v332
    %v347 = vpack.c.b16 %v335, %v334
    %v348 = vpack.c.b16 %v337, %v336
    %v349 = vpack.c.b16 %v339, %v338
    %v350 = vpack.c.b16 %v341, %v340
    %v351 = vpack.c.b16 %v343, %v342
    %360 = vmatprep.subr.bf16.mxu0 0
    %361 = vmatpush1.bf16.msra.mxu0 %v344
    %362 = vmatprep.subr.bf16.mxu0 0
    %363 = vmatpush1.bf16.msra.mxu0 %v345
    %364 = vmatprep.subr.bf16.mxu0 0
    %365 = vmatpush1.bf16.msra.mxu0 %v346
    %366 = vmatprep.subr.bf16.mxu0 0
    %367 = vmatpush1.bf16.msra.mxu0 %v347
    %368 = vmatprep.subr.bf16.mxu0 0
    %369 = vmatpush1.bf16.msra.mxu0 %v348
    %370 = vmatprep.subr.bf16.mxu0 0
    %371 = vmatpush1.bf16.msra.mxu0 %v349
    %372 = vmatprep.subr.bf16.mxu0 0
    %373 = vmatpush1.bf16.msra.mxu0 %v350
    %374 = vmatprep.subr.bf16.mxu0 0
    %375 = vmatpush1.bf16.msra.mxu0 %v351
    %376 = vmatprep.subr.bf16.mxu0 0
    %377 = vmatpush1.bf16.msra.mxu0 0
    %378 = vmatprep.subr.bf16.mxu0 0
    %379 = vmatpush1.bf16.msra.mxu0 0
    %380 = vmatprep.subr.bf16.mxu0 0
    %381 = vmatpush1.bf16.msra.mxu0 0
    %382 = vmatprep.subr.bf16.mxu0 0
    %383 = vmatpush1.bf16.msra.mxu0 0
    %384 = vmatprep.subr.bf16.mxu0 0
    %385 = vmatpush1.bf16.msra.mxu0 0
    %386 = vmatprep.subr.bf16.mxu0 0
    %387 = vmatpush1.bf16.msra.mxu0 0
    %388 = vmatprep.subr.bf16.mxu0 0
    %389 = vmatpush1.bf16.msra.mxu0 0
    %390 = vmatprep.subr.bf16.mxu0 0
    %391 = vmatpush1.bf16.msra.mxu0 0
    %392 = vmatprep.mubr.bf16.mxu0 0
    %393 = vmatmul.mubr.bf16.gmra.mrb[0].mxu0 %v304
    %v394 = vpop.f32.mrb[0].mxu0
    %v395 = vadd.f32 0.0, %v394
    %v396 = vpop.f32.mrb[0].mxu0
    %v397 = vpop.f32.mrb[0].mxu0
    %v398 = vadd.f32 0.0, %v397
    %v399 = vpop.f32.mrb[0].mxu0
    %400 = vmatprep.mubr.bf16.mxu0 0
    %401 = vmatmul.mubr.bf16.gmra.mrb[0].mxu0 %v305
    %v402 = vpop.f32.mrb[0].mxu0
    %v403 = vadd.f32 0.0, %v402
    %v404 = vpop.f32.mrb[0].mxu0
    %v405 = vpop.f32.mrb[0].mxu0
    %v406 = vadd.f32 0.0, %v405
    %v407 = vpop.f32.mrb[0].mxu0
    %408 = vmatprep.mubr.bf16.mxu0 0
    %409 = vmatmul.mubr.bf16.gmra.mrb[0].mxu0 %v306
    %v410 = vpop.f32.mrb[0].mxu0
    %v411 = vadd.f32 0.0, %v410
    %v412 = vpop.f32.mrb[0].mxu0
    %v413 = vpop.f32.mrb[0].mxu0
    %v414 = vadd.f32 0.0, %v413
    %v415 = vpop.f32.mrb[0].mxu0
    %416 = vmatprep.mubr.bf16.mxu0 0
    %417 = vmatmul.mubr.bf16.gmra.mrb[0].mxu0 %v307
    %v418 = vpop.f32.mrb[0].mxu0
    %v419 = vadd.f32 0.0, %v418
    %v420 = vpop.f32.mrb[0].mxu0
    %v421 = vpop.f32.mrb[0].mxu0
    %v422 = vadd.f32 0.0, %v421
    %v423 = vpop.f32.mrb[0].mxu0
    %424 = vmatprep.mubr.bf16.mxu0 0
    %425 = vmatmul.mubr.bf16.gmra.mrb[0].mxu0 %v308
    %v426 = vpop.f32.mrb[0].mxu0
    %v427 = vadd.f32 0.0, %v426
    %v428 = vpop.f32.mrb[0].mxu0
    %v429 = vpop.f32.mrb[0].mxu0
    %v430 = vadd.f32 0.0, %v429
    %v431 = vpop.f32.mrb[0].mxu0
    %432 = vmatprep.mubr.bf16.mxu0 0
    %433 = vmatmul.mubr.bf16.gmra.mrb[0].mxu0 %v309
    %v434 = vpop.f32.mrb[0].mxu0
    %v435 = vadd.f32 0.0, %v434
    %v436 = vpop.f32.mrb[0].mxu0
    %v437 = vpop.f32.mrb[0].mxu0
    %v438 = vadd.f32 0.0, %v437
    %v439 = vpop.f32.mrb[0].mxu0
    %440 = vmatprep.mubr.bf16.mxu0 0
    %441 = vmatmul.mubr.bf16.gmra.mrb[0].mxu0 %v310
    %v442 = vpop.f32.mrb[0].mxu0
    %v443 = vadd.f32 0.0, %v442
    %v444 = vpop.f32.mrb[0].mxu0
    %v445 = vpop.f32.mrb[0].mxu0
    %v446 = vadd.f32 0.0, %v445
    %v447 = vpop.f32.mrb[0].mxu0
    %448 = vmatprep.mubr.bf16.mxu0 0
    %449 = vmatmul.mubr.bf16.gmra.mrb[0].mxu0 %v311
    %v450 = vpop.f32.mrb[0].mxu0
    %v451 = vadd.f32 0.0, %v450
    %v452 = vpop.f32.mrb[0].mxu0
    %v453 = vpop.f32.mrb[0].mxu0
    %v454 = vadd.f32 0.0, %v453
    %v455 = vpop.f32.mrb[0].mxu0
    %456 = vdwg.mxu0
    %457 = vadd.xlane.f32.xlu0 %v272
    %v458 = vpop.xlane.xlu0 %457
    %459 = vadd.xlane.f32.xlu0 %v273
    %v460 = vpop.xlane.xlu0 %459
    %461 = vadd.xlane.f32.xlu0 %v274
    %v462 = vpop.xlane.xlu0 %461
    %463 = vadd.xlane.f32.xlu0 %v275
    %v464 = vpop.xlane.xlu0 %463
    %465 = vadd.xlane.f32.xlu0 %v276
    %v466 = vpop.xlane.xlu0 %465
    %467 = vadd.xlane.f32.xlu0 %v277
    %v468 = vpop.xlane.xlu0 %467
    %469 = vadd.xlane.f32.xlu0 %v278
    %v470 = vpop.xlane.xlu0 %469
    %471 = vadd.xlane.f32.xlu0 %v279
    %v472 = vpop.xlane.xlu0 %471
    %473 = vadd.xlane.f32.xlu0 %v280
    %v474 = vpop.xlane.xlu0 %473
    %475 = vadd.xlane.f32.xlu0 %v281
    %v476 = vpop.xlane.xlu0 %475
    %477 = vadd.xlane.f32.xlu0 %v282
    %v478 = vpop.xlane.xlu0 %477
    %479 = vadd.xlane.f32.xlu0 %v283
    %v480 = vpop.xlane.xlu0 %479
    %481 = vadd.xlane.f32.xlu0 %v284
    %v482 = vpop.xlane.xlu0 %481
    %483 = vadd.xlane.f32.xlu0 %v285
    %v484 = vpop.xlane.xlu0 %483
    %485 = vadd.xlane.f32.xlu0 %v286
    %v486 = vpop.xlane.xlu0 %485
    %487 = vadd.xlane.f32.xlu0 %v287
    %v488 = vpop.xlane.xlu0 %487
    %v489 = vsub.f32 2.3025851, %v395
    %v490 = vsub.f32 2.3025851, %v398
    %v491 = vsub.f32 2.3025851, %v403
    %v492 = vsub.f32 2.3025851, %v406
    %v493 = vsub.f32 2.3025851, %v411
    %v494 = vsub.f32 2.3025851, %v414
    %v495 = vsub.f32 2.3025851, %v419
    %v496 = vsub.f32 2.3025851, %v422
    %v497 = vsub.f32 2.3025851, %v427
    %v498 = vsub.f32 2.3025851, %v430
    %v499 = vsub.f32 2.3025851, %v435
    %v500 = vsub.f32 2.3025851, %v438
    %v501 = vsub.f32 2.3025851, %v443
    %v502 = vsub.f32 2.3025851, %v446
    %v503 = vsub.f32 2.3025851, %v451
    %v504 = vsub.f32 2.3025851, %v454
    %v505 = vmul.f32 %v489, 1.442695
    %v506 = vpow.pop %v505
    %v507 = vmul.f32 %v490, 1.442695
    %v508 = vpow.pop %v507
    %v509 = vmul.f32 %v491, 1.442695
    %v510 = vpow.pop %v509
    %v511 = vmul.f32 %v492, 1.442695
    %v512 = vpow.pop %v511
    %v513 = vmul.f32 %v493, 1.442695
    %v514 = vpow.pop %v513
    %v515 = vmul.f32 %v494, 1.442695
    %v516 = vpow.pop %v515
    %v517 = vmul.f32 %v495, 1.442695
    %v518 = vpow.pop %v517
    %v519 = vmul.f32 %v496, 1.442695
    %v520 = vpow.pop %v519
    %v521 = vmul.f32 %v497, 1.442695
    %v522 = vpow.pop %v521
    %v523 = vmul.f32 %v498, 1.442695
    %v524 = vpow.pop %v523
    %v525 = vmul.f32 %v499, 1.442695
    %v526 = vpow.pop %v525
    %v527 = vmul.f32 %v500, 1.442695
    %v528 = vpow.pop %v527
    %v529 = vmul.f32 %v501, 1.442695
    %v530 = vpow.pop %v529
    %v531 = vmul.f32 %v502, 1.442695
    %v532 = vpow.pop %v531
    %v533 = vmul.f32 %v503, 1.442695
    %v534 = vpow.pop %v533
    %v535 = vmul.f32 %v504, 1.442695
    %v536 = vpow.pop %v535
    %v537 = vsub.f32 2.3025851, %v458
    %v538 = vsub.f32 2.3025851, %v460
    %v539 = vsub.f32 2.3025851, %v462
    %v540 = vsub.f32 2.3025851, %v464
    %v541 = vsub.f32 2.3025851, %v466
    %v542 = vsub.f32 2.3025851, %v468
    %v543 = vsub.f32 2.3025851, %v470
    %v544 = vsub.f32 2.3025851, %v472
    %v545 = vsub.f32 2.3025851, %v474
    %v546 = vsub.f32 2.3025851, %v476
    %v547 = vsub.f32 2.3025851, %v478
    %v548 = vsub.f32 2.3025851, %v480
    %v549 = vsub.f32 2.3025851, %v482
    %v550 = vsub.f32 2.3025851, %v484
    %v551 = vsub.f32 2.3025851, %v486
    %v552 = vsub.f32 2.3025851, %v488
    %v553 = vmul.f32 %v537, 1.442695
    %v554 = vpow.pop %v553
    %v555 = vmul.f32 %v538, 1.442695
    %v556 = vpow.pop %v555
    %v557 = vmul.f32 %v539, 1.442695
    %v558 = vpow.pop %v557
    %v559 = vmul.f32 %v540, 1.442695
    %v560 = vpow.pop %v559
    %v561 = vmul.f32 %v541, 1.442695
    %v562 = vpow.pop %v561
    %v563 = vmul.f32 %v542, 1.442695
    %v564 = vpow.pop %v563
    %v565 = vmul.f32 %v543, 1.442695
    %v566 = vpow.pop %v565
    %v567 = vmul.f32 %v544, 1.442695
    %v568 = vpow.pop %v567
    %v569 = vmul.f32 %v545, 1.442695
    %v570 = vpow.pop %v569
    %v571 = vmul.f32 %v546, 1.442695
    %v572 = vpow.pop %v571
    %v573 = vmul.f32 %v547, 1.442695
    %v574 = vpow.pop %v573
    %v575 = vmul.f32 %v548, 1.442695
    %v576 = vpow.pop %v575
    %v577 = vmul.f32 %v549, 1.442695
    %v578 = vpow.pop %v577
    %v579 = vmul.f32 %v550, 1.442695
    %v580 = vpow.pop %v579
    %v581 = vmul.f32 %v551, 1.442695
    %v582 = vpow.pop %v581
    %v583 = vmul.f32 %v552, 1.442695
    %v584 = vpow.pop %v583
    %v601 = vlaneseq
    %v602 = vand.u32 %v601, 127
    %v603 = vlaneseq
    %v604 = vshrl.u32 %v603, 7
    %v605 = vsub.s32 %v602, %v604
    %v606 = vrot.slane %v554, %v605
    %v607 = vadd.s32 %v602, 4294967288
    %v608 = vlaneseq
    %v609 = vshrl.u32 %v608, 7
    %v610 = vsub.s32 %v607, %v609
    %v611 = vrot.slane %v556, %v610
    %vm612 = vcmask 130112
    %v613 = vsel %vm612, %v611, %v606
    %v614 = vadd.s32 %v602, 4294967280
    %v615 = vlaneseq
    %v616 = vshrl.u32 %v615, 7
    %v617 = vsub.s32 %v614, %v616
    %v618 = vrot.slane %v558, %v617
    %vm619 = vcmask 195712
    %v620 = vsel %vm619, %v618, %v613
    %v621 = vadd.s32 %v602, 4294967272
    %v622 = vlaneseq
    %v623 = vshrl.u32 %v622, 7
    %v624 = vsub.s32 %v621, %v623
    %v625 = vrot.slane %v560, %v624
    %vm626 = vcmask 261312
    %v627 = vsel %vm626, %v625, %v620
    %v628 = vadd.s32 %v602, 4294967264
    %v629 = vlaneseq
    %v630 = vshrl.u32 %v629, 7
    %v631 = vsub.s32 %v628, %v630
    %v632 = vrot.slane %v562, %v631
    %vm633 = vcmask 326912
    %v634 = vsel %vm633, %v632, %v627
    %v635 = vadd.s32 %v602, 4294967256
    %v636 = vlaneseq
    %v637 = vshrl.u32 %v636, 7
    %v638 = vsub.s32 %v635, %v637
    %v639 = vrot.slane %v564, %v638
    %vm640 = vcmask 392512
    %v641 = vsel %vm640, %v639, %v634
    %v642 = vadd.s32 %v602, 4294967248
    %v643 = vlaneseq
    %v644 = vshrl.u32 %v643, 7
    %v645 = vsub.s32 %v642, %v644
    %v646 = vrot.slane %v566, %v645
    %vm647 = vcmask 458112
    %v648 = vsel %vm647, %v646, %v641
    %v649 = vadd.s32 %v602, 4294967240
    %v650 = vlaneseq
    %v651 = vshrl.u32 %v650, 7
    %v652 = vsub.s32 %v649, %v651
    %v653 = vrot.slane %v568, %v652
    %vm654 = vcmask 523712
    %v655 = vsel %vm654, %v653, %v648
    %v656 = vadd.s32 %v602, 4294967232
    %v657 = vlaneseq
    %v658 = vshrl.u32 %v657, 7
    %v659 = vsub.s32 %v656, %v658
    %v660 = vrot.slane %v570, %v659
    %vm661 = vcmask 589312
    %v662 = vsel %vm661, %v660, %v655
    %v663 = vadd.s32 %v602, 4294967224
    %v664 = vlaneseq
    %v665 = vshrl.u32 %v664, 7
    %v666 = vsub.s32 %v663, %v665
    %v667 = vrot.slane %v572, %v666
    %vm668 = vcmask 654912
    %v669 = vsel %vm668, %v667, %v662
    %v670 = vadd.s32 %v602, 4294967216
    %v671 = vlaneseq
    %v672 = vshrl.u32 %v671, 7
    %v673 = vsub.s32 %v670, %v672
    %v674 = vrot.slane %v574, %v673
    %vm675 = vcmask 720512
    %v676 = vsel %vm675, %v674, %v669
    %v677 = vadd.s32 %v602, 4294967208
    %v678 = vlaneseq
    %v679 = vshrl.u32 %v678, 7
    %v680 = vsub.s32 %v677, %v679
    %v681 = vrot.slane %v576, %v680
    %vm682 = vcmask 786112
    %v683 = vsel %vm682, %v681, %v676
    %v684 = vadd.s32 %v602, 4294967200
    %v685 = vlaneseq
    %v686 = vshrl.u32 %v685, 7
    %v687 = vsub.s32 %v684, %v686
    %v688 = vrot.slane %v578, %v687
    %vm689 = vcmask 851712
    %v690 = vsel %vm689, %v688, %v683
    %v691 = vadd.s32 %v602, 4294967192
    %v692 = vlaneseq
    %v693 = vshrl.u32 %v692, 7
    %v694 = vsub.s32 %v691, %v693
    %v695 = vrot.slane %v580, %v694
    %vm696 = vcmask 917312
    %v697 = vsel %vm696, %v695, %v690
    %v698 = vadd.s32 %v602, 4294967184
    %v699 = vlaneseq
    %v700 = vshrl.u32 %v699, 7
    %v701 = vsub.s32 %v698, %v700
    %v702 = vrot.slane %v582, %v701
    %vm703 = vcmask 982912
    %v704 = vsel %vm703, %v702, %v697
    %v705 = vadd.s32 %v602, 4294967176
    %v706 = vlaneseq
    %v707 = vshrl.u32 %v706, 7
    %v708 = vsub.s32 %v705, %v707
    %v709 = vrot.slane %v584, %v708
    %vm710 = vcmask 1048512
    %v711 = vsel %vm710, %v709, %v704
    %713 = vst [vmem:[#allocation9] sm:$0x1] %v711
    %v714 = vld [vmem:[#allocation5] sm:$0xff]
    %v715 = vld [vmem:[#allocation5 + $0x8] sm:$0xff]
    %v716 = vld [vmem:[#allocation5 + $0x10] sm:$0xff]
    %v717 = vld [vmem:[#allocation5 + $0x18] sm:$0xff]
    %v718 = vld [vmem:[#allocation5 + $0x20] sm:$0xff]
    %v719 = vld [vmem:[#allocation5 + $0x28] sm:$0xff]
    %v720 = vld [vmem:[#allocation5 + $0x30] sm:$0xff]
    %v721 = vld [vmem:[#allocation5 + $0x38] sm:$0xff]
    %v722 = vld [vmem:[#allocation5 + $0x40] sm:$0xff]
    %v723 = vld [vmem:[#allocation5 + $0x48] sm:$0xff]
    %v724 = vld [vmem:[#allocation5 + $0x50] sm:$0xff]
    %v725 = vld [vmem:[#allocation5 + $0x58] sm:$0xff]
    %v726 = vld [vmem:[#allocation5 + $0x60] sm:$0xff]
    %v727 = vld [vmem:[#allocation5 + $0x68] sm:$0xff]
    %v728 = vld [vmem:[#allocation5 + $0x70] sm:$0xff]
    %v729 = vld [vmem:[#allocation5 + $0x78] sm:$0xff]
    %v730 = vmul.f32 %v506, %v714
    %v731 = vmul.f32 %v508, %v715
    %v732 = vmul.f32 %v510, %v716
    %v733 = vmul.f32 %v512, %v717
    %v734 = vmul.f32 %v514, %v718
    %v735 = vmul.f32 %v516, %v719
    %v736 = vmul.f32 %v518, %v720
    %v737 = vmul.f32 %v520, %v721
    %v738 = vmul.f32 %v522, %v722
    %v739 = vmul.f32 %v524, %v723
    %v740 = vmul.f32 %v526, %v724
    %v741 = vmul.f32 %v528, %v725
    %v742 = vmul.f32 %v530, %v726
    %v743 = vmul.f32 %v532, %v727
    %v744 = vmul.f32 %v534, %v728
    %v745 = vmul.f32 %v536, %v729
    %v746 = vld [vmem:[#allocation7] sm:$0xff]
    %v747 = vld [vmem:[#allocation7 + $0x8] sm:$0xff]
    %v748 = vld [vmem:[#allocation7 + $0x10] sm:$0xff]
    %v749 = vld [vmem:[#allocation7 + $0x18] sm:$0xff]
    %v750 = vld [vmem:[#allocation7 + $0x20] sm:$0xff]
    %v751 = vld [vmem:[#allocation7 + $0x28] sm:$0xff]
    %v752 = vld [vmem:[#allocation7 + $0x30] sm:$0xff]
    %v753 = vld [vmem:[#allocation7 + $0x38] sm:$0xff]
    %v754 = vld [vmem:[#allocation7 + $0x40] sm:$0xff]
    %v755 = vld [vmem:[#allocation7 + $0x48] sm:$0xff]
    %v756 = vld [vmem:[#allocation7 + $0x50] sm:$0xff]
    %v757 = vld [vmem:[#allocation7 + $0x58] sm:$0xff]
    %v758 = vld [vmem:[#allocation7 + $0x60] sm:$0xff]
    %v759 = vld [vmem:[#allocation7 + $0x68] sm:$0xff]
    %v760 = vld [vmem:[#allocation7 + $0x70] sm:$0xff]
    %v761 = vld [vmem:[#allocation7 + $0x78] sm:$0xff]
    %v762 = vmul.f32 %v730, %v746
    %v763 = vmul.f32 %v731, %v747
    %v764 = vmul.f32 %v732, %v748
    %v765 = vmul.f32 %v733, %v749
    %v766 = vmul.f32 %v734, %v750
    %v767 = vmul.f32 %v735, %v751
    %v768 = vmul.f32 %v736, %v752
    %v769 = vmul.f32 %v737, %v753
    %v770 = vmul.f32 %v738, %v754
    %v771 = vmul.f32 %v739, %v755
    %v772 = vmul.f32 %v740, %v756
    %v773 = vmul.f32 %v741, %v757
    %v774 = vmul.f32 %v742, %v758
    %v775 = vmul.f32 %v743, %v759
    %v776 = vmul.f32 %v744, %v760
    %v777 = vmul.f32 %v745, %v761
    %778 = vadd.xlane.f32.xlu0 %v762
    %v779 = vpop.xlane.xlu0 %778
    %780 = vadd.xlane.f32.xlu0 %v763
    %v781 = vpop.xlane.xlu0 %780
    %782 = vadd.xlane.f32.xlu0 %v764
    %v783 = vpop.xlane.xlu0 %782
    %784 = vadd.xlane.f32.xlu0 %v765
    %v785 = vpop.xlane.xlu0 %784
    %786 = vadd.xlane.f32.xlu0 %v766
    %v787 = vpop.xlane.xlu0 %786
    %788 = vadd.xlane.f32.xlu0 %v767
    %v789 = vpop.xlane.xlu0 %788
    %790 = vadd.xlane.f32.xlu0 %v768
    %v791 = vpop.xlane.xlu0 %790
    %792 = vadd.xlane.f32.xlu0 %v769
    %v793 = vpop.xlane.xlu0 %792
    %794 = vadd.xlane.f32.xlu0 %v770
    %v795 = vpop.xlane.xlu0 %794
    %796 = vadd.xlane.f32.xlu0 %v771
    %v797 = vpop.xlane.xlu0 %796
    %798 = vadd.xlane.f32.xlu0 %v772
    %v799 = vpop.xlane.xlu0 %798
    %800 = vadd.xlane.f32.xlu0 %v773
    %v801 = vpop.xlane.xlu0 %800
    %802 = vadd.xlane.f32.xlu0 %v774
    %v803 = vpop.xlane.xlu0 %802
    %804 = vadd.xlane.f32.xlu0 %v775
    %v805 = vpop.xlane.xlu0 %804
    %806 = vadd.xlane.f32.xlu0 %v776
    %v807 = vpop.xlane.xlu0 %806
    %808 = vadd.xlane.f32.xlu0 %v777
    %v809 = vpop.xlane.xlu0 %808
    %s810 = scalar_lea.vmem [#allocation7], 128
    %v811 = vld [vmem:[%s810] sm:$0xff]
    %v812 = vld [vmem:[%s810 + $0x8] sm:$0xff]
    %v813 = vld [vmem:[%s810 + $0x10] sm:$0xff]
    %v814 = vld [vmem:[%s810 + $0x18] sm:$0xff]
    %v815 = vld [vmem:[%s810 + $0x20] sm:$0xff]
    %v816 = vld [vmem:[%s810 + $0x28] sm:$0xff]
    %v817 = vld [vmem:[%s810 + $0x30] sm:$0xff]
    %v818 = vld [vmem:[%s810 + $0x38] sm:$0xff]
    %v819 = vld [vmem:[%s810 + $0x40] sm:$0xff]
    %v820 = vld [vmem:[%s810 + $0x48] sm:$0xff]
    %v821 = vld [vmem:[%s810 + $0x50] sm:$0xff]
    %v822 = vld [vmem:[%s810 + $0x58] sm:$0xff]
    %v823 = vld [vmem:[%s810 + $0x60] sm:$0xff]
    %v824 = vld [vmem:[%s810 + $0x68] sm:$0xff]
    %v825 = vld [vmem:[%s810 + $0x70] sm:$0xff]
    %v826 = vld [vmem:[%s810 + $0x78] sm:$0xff]
    %v827 = vmul.f32 %v730, %v811
    %v828 = vmul.f32 %v731, %v812
    %v829 = vmul.f32 %v732, %v813
    %v830 = vmul.f32 %v733, %v814
    %v831 = vmul.f32 %v734, %v815
    %v832 = vmul.f32 %v735, %v816
    %v833 = vmul.f32 %v736, %v817
    %v834 = vmul.f32 %v737, %v818
    %v835 = vmul.f32 %v738, %v819
    %v836 = vmul.f32 %v739, %v820
    %v837 = vmul.f32 %v740, %v821
    %v838 = vmul.f32 %v741, %v822
    %v839 = vmul.f32 %v742, %v823
    %v840 = vmul.f32 %v743, %v824
    %v841 = vmul.f32 %v744, %v825
    %v842 = vmul.f32 %v745, %v826
    %843 = vadd.xlane.f32.xlu0 %v827
    %v844 = vpop.xlane.xlu0 %843
    %845 = vadd.xlane.f32.xlu0 %v828
    %v846 = vpop.xlane.xlu0 %845
    %847 = vadd.xlane.f32.xlu0 %v829
    %v848 = vpop.xlane.xlu0 %847
    %849 = vadd.xlane.f32.xlu0 %v830
    %v850 = vpop.xlane.xlu0 %849
    %851 = vadd.xlane.f32.xlu0 %v831
    %v852 = vpop.xlane.xlu0 %851
    %853 = vadd.xlane.f32.xlu0 %v832
    %v854 = vpop.xlane.xlu0 %853
    %855 = vadd.xlane.f32.xlu0 %v833
    %v856 = vpop.xlane.xlu0 %855
    %857 = vadd.xlane.f32.xlu0 %v834
    %v858 = vpop.xlane.xlu0 %857
    %859 = vadd.xlane.f32.xlu0 %v835
    %v860 = vpop.xlane.xlu0 %859
    %861 = vadd.xlane.f32.xlu0 %v836
    %v862 = vpop.xlane.xlu0 %861
    %863 = vadd.xlane.f32.xlu0 %v837
    %v864 = vpop.xlane.xlu0 %863
    %865 = vadd.xlane.f32.xlu0 %v838
    %v866 = vpop.xlane.xlu0 %865
    %867 = vadd.xlane.f32.xlu0 %v839
    %v868 = vpop.xlane.xlu0 %867
    %869 = vadd.xlane.f32.xlu0 %v840
    %v870 = vpop.xlane.xlu0 %869
    %871 = vadd.xlane.f32.xlu0 %v841
    %v872 = vpop.xlane.xlu0 %871
    %873 = vadd.xlane.f32.xlu0 %v842
    %v874 = vpop.xlane.xlu0 %873
    %v875 = vld [vmem:[%s108] sm:$0xff]
    %v876 = vld [vmem:[%s108 + $0x8] sm:$0xff]
    %v877 = vld [vmem:[%s108 + $0x10] sm:$0xff]
    %v878 = vld [vmem:[%s108 + $0x18] sm:$0xff]
    %v879 = vld [vmem:[%s108 + $0x20] sm:$0xff]
    %v880 = vld [vmem:[%s108 + $0x28] sm:$0xff]
    %v881 = vld [vmem:[%s108 + $0x30] sm:$0xff]
    %v882 = vld [vmem:[%s108 + $0x38] sm:$0xff]
    %v883 = vld [vmem:[%s108 + $0x40] sm:$0xff]
    %v884 = vld [vmem:[%s108 + $0x48] sm:$0xff]
    %v885 = vld [vmem:[%s108 + $0x50] sm:$0xff]
    %v886 = vld [vmem:[%s108 + $0x58] sm:$0xff]
    %v887 = vld [vmem:[%s108 + $0x60] sm:$0xff]
    %v888 = vld [vmem:[%s108 + $0x68] sm:$0xff]
    %v889 = vld [vmem:[%s108 + $0x70] sm:$0xff]
    %v890 = vld [vmem:[%s108 + $0x78] sm:$0xff]
    %v891 = vmul.f32 %v506, %v875
    %v892 = vmul.f32 %v508, %v876
    %v893 = vmul.f32 %v510, %v877
    %v894 = vmul.f32 %v512, %v878
    %v895 = vmul.f32 %v514, %v879
    %v896 = vmul.f32 %v516, %v880
    %v897 = vmul.f32 %v518, %v881
    %v898 = vmul.f32 %v520, %v882
    %v899 = vmul.f32 %v522, %v883
    %v900 = vmul.f32 %v524, %v884
    %v901 = vmul.f32 %v526, %v885
    %v902 = vmul.f32 %v528, %v886
    %v903 = vmul.f32 %v530, %v887
    %v904 = vmul.f32 %v532, %v888
    %v905 = vmul.f32 %v534, %v889
    %v906 = vmul.f32 %v536, %v890
    %s907 = scalar_lea.vmem [#allocation7], 256
    %v908 = vld [vmem:[%s907] sm:$0xff]
    %v909 = vld [vmem:[%s907 + $0x8] sm:$0xff]
    %v910 = vld [vmem:[%s907 + $0x10] sm:$0xff]
    %v911 = vld [vmem:[%s907 + $0x18] sm:$0xff]
    %v912 = vld [vmem:[%s907 + $0x20] sm:$0xff]
    %v913 = vld [vmem:[%s907 + $0x28] sm:$0xff]
    %v914 = vld [vmem:[%s907 + $0x30] sm:$0xff]
    %v915 = vld [vmem:[%s907 + $0x38] sm:$0xff]
    %v916 = vld [vmem:[%s907 + $0x40] sm:$0xff]
    %v917 = vld [vmem:[%s907 + $0x48] sm:$0xff]
    %v918 = vld [vmem:[%s907 + $0x50] sm:$0xff]
    %v919 = vld [vmem:[%s907 + $0x58] sm:$0xff]
    %v920 = vld [vmem:[%s907 + $0x60] sm:$0xff]
    %v921 = vld [vmem:[%s907 + $0x68] sm:$0xff]
    %v922 = vld [vmem:[%s907 + $0x70] sm:$0xff]
    %v923 = vld [vmem:[%s907 + $0x78] sm:$0xff]
    %v924 = vmul.f32 %v891, %v908
    %v925 = vmul.f32 %v892, %v909
    %v926 = vmul.f32 %v893, %v910
    %v927 = vmul.f32 %v894, %v911
    %v928 = vmul.f32 %v895, %v912
    %v929 = vmul.f32 %v896, %v913
    %v930 = vmul.f32 %v897, %v914
    %v931 = vmul.f32 %v898, %v915
    %v932 = vmul.f32 %v899, %v916
    %v933 = vmul.f32 %v900, %v917
    %v934 = vmul.f32 %v901, %v918
    %v935 = vmul.f32 %v902, %v919
    %v936 = vmul.f32 %v903, %v920
    %v937 = vmul.f32 %v904, %v921
    %v938 = vmul.f32 %v905, %v922
    %v939 = vmul.f32 %v906, %v923
    %940 = vadd.xlane.f32.xlu0 %v924
    %v941 = vpop.xlane.xlu0 %940
    %942 = vadd.xlane.f32.xlu0 %v925
    %v943 = vpop.xlane.xlu0 %942
    %944 = vadd.xlane.f32.xlu0 %v926
    %v945 = vpop.xlane.xlu0 %944
    %946 = vadd.xlane.f32.xlu0 %v927
    %v947 = vpop.xlane.xlu0 %946
    %948 = vadd.xlane.f32.xlu0 %v928
    %v949 = vpop.xlane.xlu0 %948
    %950 = vadd.xlane.f32.xlu0 %v929
    %v951 = vpop.xlane.xlu0 %950
    %952 = vadd.xlane.f32.xlu0 %v930
    %v953 = vpop.xlane.xlu0 %952
    %954 = vadd.xlane.f32.xlu0 %v931
    %v955 = vpop.xlane.xlu0 %954
    %956 = vadd.xlane.f32.xlu0 %v932
    %v957 = vpop.xlane.xlu0 %956
    %958 = vadd.xlane.f32.xlu0 %v933
    %v959 = vpop.xlane.xlu0 %958
    %960 = vadd.xlane.f32.xlu0 %v934
    %v961 = vpop.xlane.xlu0 %960
    %962 = vadd.xlane.f32.xlu0 %v935
    %v963 = vpop.xlane.xlu0 %962
    %964 = vadd.xlane.f32.xlu0 %v936
    %v965 = vpop.xlane.xlu0 %964
    %966 = vadd.xlane.f32.xlu0 %v937
    %v967 = vpop.xlane.xlu0 %966
    %968 = vadd.xlane.f32.xlu0 %v938
    %v969 = vpop.xlane.xlu0 %968
    %970 = vadd.xlane.f32.xlu0 %v939
    %v971 = vpop.xlane.xlu0 %970
    %s972 = scalar_lea.vmem [#allocation7], 384
    %v973 = vld [vmem:[%s972] sm:$0xff]
    %v974 = vld [vmem:[%s972 + $0x8] sm:$0xff]
    %v975 = vld [vmem:[%s972 + $0x10] sm:$0xff]
    %v976 = vld [vmem:[%s972 + $0x18] sm:$0xff]
    %v977 = vld [vmem:[%s972 + $0x20] sm:$0xff]
    %v978 = vld [vmem:[%s972 + $0x28] sm:$0xff]
    %v979 = vld [vmem:[%s972 + $0x30] sm:$0xff]
    %v980 = vld [vmem:[%s972 + $0x38] sm:$0xff]
    %v981 = vld [vmem:[%s972 + $0x40] sm:$0xff]
    %v982 = vld [vmem:[%s972 + $0x48] sm:$0xff]
    %v983 = vld [vmem:[%s972 + $0x50] sm:$0xff]
    %v984 = vld [vmem:[%s972 + $0x58] sm:$0xff]
    %v985 = vld [vmem:[%s972 + $0x60] sm:$0xff]
    %v986 = vld [vmem:[%s972 + $0x68] sm:$0xff]
    %v987 = vld [vmem:[%s972 + $0x70] sm:$0xff]
    %v988 = vld [vmem:[%s972 + $0x78] sm:$0xff]
    %v989 = vmul.f32 %v891, %v973
    %v990 = vmul.f32 %v892, %v974
    %v991 = vmul.f32 %v893, %v975
    %v992 = vmul.f32 %v894, %v976
    %v993 = vmul.f32 %v895, %v977
    %v994 = vmul.f32 %v896, %v978
    %v995 = vmul.f32 %v897, %v979
    %v996 = vmul.f32 %v898, %v980
    %v997 = vmul.f32 %v899, %v981
    %v998 = vmul.f32 %v900, %v982
    %v999 = vmul.f32 %v901, %v983
    %v1000 = vmul.f32 %v902, %v984
    %v1001 = vmul.f32 %v903, %v985
    %v1002 = vmul.f32 %v904, %v986
    %v1003 = vmul.f32 %v905, %v987
    %v1004 = vmul.f32 %v906, %v988
    %1005 = vadd.xlane.f32.xlu0 %v989
    %v1006 = vpop.xlane.xlu0 %1005
    %1007 = vadd.xlane.f32.xlu0 %v990
    %v1008 = vpop.xlane.xlu0 %1007
    %1009 = vadd.xlane.f32.xlu0 %v991
    %v1010 = vpop.xlane.xlu0 %1009
    %1011 = vadd.xlane.f32.xlu0 %v992
    %v1012 = vpop.xlane.xlu0 %1011
    %1013 = vadd.xlane.f32.xlu0 %v993
    %v1014 = vpop.xlane.xlu0 %1013
    %1015 = vadd.xlane.f32.xlu0 %v994
    %v1016 = vpop.xlane.xlu0 %1015
    %1017 = vadd.xlane.f32.xlu0 %v995
    %v1018 = vpop.xlane.xlu0 %1017
    %1019 = vadd.xlane.f32.xlu0 %v996
    %v1020 = vpop.xlane.xlu0 %1019
    %1021 = vadd.xlane.f32.xlu0 %v997
    %v1022 = vpop.xlane.xlu0 %1021
    %1023 = vadd.xlane.f32.xlu0 %v998
    %v1024 = vpop.xlane.xlu0 %1023
    %1025 = vadd.xlane.f32.xlu0 %v999
    %v1026 = vpop.xlane.xlu0 %1025
    %1027 = vadd.xlane.f32.xlu0 %v1000
    %v1028 = vpop.xlane.xlu0 %1027
    %1029 = vadd.xlane.f32.xlu0 %v1001
    %v1030 = vpop.xlane.xlu0 %1029
    %1031 = vadd.xlane.f32.xlu0 %v1002
    %v1032 = vpop.xlane.xlu0 %1031
    %1033 = vadd.xlane.f32.xlu0 %v1003
    %v1034 = vpop.xlane.xlu0 %1033
    %1035 = vadd.xlane.f32.xlu0 %v1004
    %v1036 = vpop.xlane.xlu0 %1035
    %s1037 = scalar_lea.vmem [#allocation7], 512
    %v1038 = vld [vmem:[%s1037] sm:$0xff]
    %v1039 = vld [vmem:[%s1037 + $0x8] sm:$0xff]
    %v1040 = vld [vmem:[%s1037 + $0x10] sm:$0xff]
    %v1041 = vld [vmem:[%s1037 + $0x18] sm:$0xff]
    %v1042 = vld [vmem:[%s1037 + $0x20] sm:$0xff]
    %v1043 = vld [vmem:[%s1037 + $0x28] sm:$0xff]
    %v1044 = vld [vmem:[%s1037 + $0x30] sm:$0xff]
    %v1045 = vld [vmem:[%s1037 + $0x38] sm:$0xff]
    %v1046 = vld [vmem:[%s1037 + $0x40] sm:$0xff]
    %v1047 = vld [vmem:[%s1037 + $0x48] sm:$0xff]
    %v1048 = vld [vmem:[%s1037 + $0x50] sm:$0xff]
    %v1049 = vld [vmem:[%s1037 + $0x58] sm:$0xff]
    %v1050 = vld [vmem:[%s1037 + $0x60] sm:$0xff]
    %v1051 = vld [vmem:[%s1037 + $0x68] sm:$0xff]
    %v1052 = vld [vmem:[%s1037 + $0x70] sm:$0xff]
    %v1053 = vld [vmem:[%s1037 + $0x78] sm:$0xff]
    %v1054 = vmul.f32 %v891, %v1038
    %v1055 = vmul.f32 %v892, %v1039
    %v1056 = vmul.f32 %v893, %v1040
    %v1057 = vmul.f32 %v894, %v1041
    %v1058 = vmul.f32 %v895, %v1042
    %v1059 = vmul.f32 %v896, %v1043
    %v1060 = vmul.f32 %v897, %v1044
    %v1061 = vmul.f32 %v898, %v1045
    %v1062 = vmul.f32 %v899, %v1046
    %v1063 = vmul.f32 %v900, %v1047
    %v1064 = vmul.f32 %v901, %v1048
    %v1065 = vmul.f32 %v902, %v1049
    %v1066 = vmul.f32 %v903, %v1050
    %v1067 = vmul.f32 %v904, %v1051
    %v1068 = vmul.f32 %v905, %v1052
    %v1069 = vmul.f32 %v906, %v1053
    %1070 = vadd.xlane.f32.xlu0 %v1054
    %v1071 = vpop.xlane.xlu0 %1070
    %1072 = vadd.xlane.f32.xlu0 %v1055
    %v1073 = vpop.xlane.xlu0 %1072
    %1074 = vadd.xlane.f32.xlu0 %v1056
    %v1075 = vpop.xlane.xlu0 %1074
    %1076 = vadd.xlane.f32.xlu0 %v1057
    %v1077 = vpop.xlane.xlu0 %1076
    %1078 = vadd.xlane.f32.xlu0 %v1058
    %v1079 = vpop.xlane.xlu0 %1078
    %1080 = vadd.xlane.f32.xlu0 %v1059
    %v1081 = vpop.xlane.xlu0 %1080
    %1082 = vadd.xlane.f32.xlu0 %v1060
    %v1083 = vpop.xlane.xlu0 %1082
    %1084 = vadd.xlane.f32.xlu0 %v1061
    %v1085 = vpop.xlane.xlu0 %1084
    %1086 = vadd.xlane.f32.xlu0 %v1062
    %v1087 = vpop.xlane.xlu0 %1086
    %1088 = vadd.xlane.f32.xlu0 %v1063
    %v1089 = vpop.xlane.xlu0 %1088
    %1090 = vadd.xlane.f32.xlu0 %v1064
    %v1091 = vpop.xlane.xlu0 %1090
    %1092 = vadd.xlane.f32.xlu0 %v1065
    %v1093 = vpop.xlane.xlu0 %1092
    %1094 = vadd.xlane.f32.xlu0 %v1066
    %v1095 = vpop.xlane.xlu0 %1094
    %1096 = vadd.xlane.f32.xlu0 %v1067
    %v1097 = vpop.xlane.xlu0 %1096
    %1098 = vadd.xlane.f32.xlu0 %v1068
    %v1099 = vpop.xlane.xlu0 %1098
    %1100 = vadd.xlane.f32.xlu0 %v1069
    %v1101 = vpop.xlane.xlu0 %1100
    %v1102 = vld [vmem:[%s168] sm:$0xff]
    %v1103 = vld [vmem:[%s168 + $0x8] sm:$0xff]
    %v1104 = vld [vmem:[%s168 + $0x10] sm:$0xff]
    %v1105 = vld [vmem:[%s168 + $0x18] sm:$0xff]
    %v1106 = vld [vmem:[%s168 + $0x20] sm:$0xff]
    %v1107 = vld [vmem:[%s168 + $0x28] sm:$0xff]
    %v1108 = vld [vmem:[%s168 + $0x30] sm:$0xff]
    %v1109 = vld [vmem:[%s168 + $0x38] sm:$0xff]
    %v1110 = vld [vmem:[%s168 + $0x40] sm:$0xff]
    %v1111 = vld [vmem:[%s168 + $0x48] sm:$0xff]
    %v1112 = vld [vmem:[%s168 + $0x50] sm:$0xff]
    %v1113 = vld [vmem:[%s168 + $0x58] sm:$0xff]
    %v1114 = vld [vmem:[%s168 + $0x60] sm:$0xff]
    %v1115 = vld [vmem:[%s168 + $0x68] sm:$0xff]
    %v1116 = vld [vmem:[%s168 + $0x70] sm:$0xff]
    %v1117 = vld [vmem:[%s168 + $0x78] sm:$0xff]
    %v1118 = vmul.f32 %v506, %v1102
    %v1119 = vmul.f32 %v508, %v1103
    %v1120 = vmul.f32 %v510, %v1104
    %v1121 = vmul.f32 %v512, %v1105
    %v1122 = vmul.f32 %v514, %v1106
    %v1123 = vmul.f32 %v516, %v1107
    %v1124 = vmul.f32 %v518, %v1108
    %v1125 = vmul.f32 %v520, %v1109
    %v1126 = vmul.f32 %v522, %v1110
    %v1127 = vmul.f32 %v524, %v1111
    %v1128 = vmul.f32 %v526, %v1112
    %v1129 = vmul.f32 %v528, %v1113
    %v1130 = vmul.f32 %v530, %v1114
    %v1131 = vmul.f32 %v532, %v1115
    %v1132 = vmul.f32 %v534, %v1116
    %v1133 = vmul.f32 %v536, %v1117
    %s1134 = scalar_lea.vmem [#allocation7], 640
    %v1135 = vld [vmem:[%s1134] sm:$0xff]
    %v1136 = vld [vmem:[%s1134 + $0x8] sm:$0xff]
    %v1137 = vld [vmem:[%s1134 + $0x10] sm:$0xff]
    %v1138 = vld [vmem:[%s1134 + $0x18] sm:$0xff]
    %v1139 = vld [vmem:[%s1134 + $0x20] sm:$0xff]
    %v1140 = vld [vmem:[%s1134 + $0x28] sm:$0xff]
    %v1141 = vld [vmem:[%s1134 + $0x30] sm:$0xff]
    %v1142 = vld [vmem:[%s1134 + $0x38] sm:$0xff]
    %v1143 = vld [vmem:[%s1134 + $0x40] sm:$0xff]
    %v1144 = vld [vmem:[%s1134 + $0x48] sm:$0xff]
    %v1145 = vld [vmem:[%s1134 + $0x50] sm:$0xff]
    %v1146 = vld [vmem:[%s1134 + $0x58] sm:$0xff]
    %v1147 = vld [vmem:[%s1134 + $0x60] sm:$0xff]
    %v1148 = vld [vmem:[%s1134 + $0x68] sm:$0xff]
    %v1149 = vld [vmem:[%s1134 + $0x70] sm:$0xff]
    %v1150 = vld [vmem:[%s1134 + $0x78] sm:$0xff]
    %v1151 = vmul.f32 %v1118, %v1135
    %v1152 = vmul.f32 %v1119, %v1136
    %v1153 = vmul.f32 %v1120, %v1137
    %v1154 = vmul.f32 %v1121, %v1138
    %v1155 = vmul.f32 %v1122, %v1139
    %v1156 = vmul.f32 %v1123, %v1140
    %v1157 = vmul.f32 %v1124, %v1141
    %v1158 = vmul.f32 %v1125, %v1142
    %v1159 = vmul.f32 %v1126, %v1143
    %v1160 = vmul.f32 %v1127, %v1144
    %v1161 = vmul.f32 %v1128, %v1145
    %v1162 = vmul.f32 %v1129, %v1146
    %v1163 = vmul.f32 %v1130, %v1147
    %v1164 = vmul.f32 %v1131, %v1148
    %v1165 = vmul.f32 %v1132, %v1149
    %v1166 = vmul.f32 %v1133, %v1150
    %1167 = vadd.xlane.f32.xlu0 %v1151
    %v1168 = vpop.xlane.xlu0 %1167
    %1169 = vadd.xlane.f32.xlu0 %v1152
    %v1170 = vpop.xlane.xlu0 %1169
    %1171 = vadd.xlane.f32.xlu0 %v1153
    %v1172 = vpop.xlane.xlu0 %1171
    %1173 = vadd.xlane.f32.xlu0 %v1154
    %v1174 = vpop.xlane.xlu0 %1173
    %1175 = vadd.xlane.f32.xlu0 %v1155
    %v1176 = vpop.xlane.xlu0 %1175
    %1177 = vadd.xlane.f32.xlu0 %v1156
    %v1178 = vpop.xlane.xlu0 %1177
    %1179 = vadd.xlane.f32.xlu0 %v1157
    %v1180 = vpop.xlane.xlu0 %1179
    %1181 = vadd.xlane.f32.xlu0 %v1158
    %v1182 = vpop.xlane.xlu0 %1181
    %1183 = vadd.xlane.f32.xlu0 %v1159
    %v1184 = vpop.xlane.xlu0 %1183
    %1185 = vadd.xlane.f32.xlu0 %v1160
    %v1186 = vpop.xlane.xlu0 %1185
    %1187 = vadd.xlane.f32.xlu0 %v1161
    %v1188 = vpop.xlane.xlu0 %1187
    %1189 = vadd.xlane.f32.xlu0 %v1162
    %v1190 = vpop.xlane.xlu0 %1189
    %1191 = vadd.xlane.f32.xlu0 %v1163
    %v1192 = vpop.xlane.xlu0 %1191
    %1193 = vadd.xlane.f32.xlu0 %v1164
    %v1194 = vpop.xlane.xlu0 %1193
    %1195 = vadd.xlane.f32.xlu0 %v1165
    %v1196 = vpop.xlane.xlu0 %1195
    %1197 = vadd.xlane.f32.xlu0 %v1166
    %v1198 = vpop.xlane.xlu0 %1197
    %v1199 = vld [vmem:[%s228] sm:$0xff]
    %v1200 = vld [vmem:[%s228 + $0x8] sm:$0xff]
    %v1201 = vld [vmem:[%s228 + $0x10] sm:$0xff]
    %v1202 = vld [vmem:[%s228 + $0x18] sm:$0xff]
    %v1203 = vld [vmem:[%s228 + $0x20] sm:$0xff]
    %v1204 = vld [vmem:[%s228 + $0x28] sm:$0xff]
    %v1205 = vld [vmem:[%s228 + $0x30] sm:$0xff]
    %v1206 = vld [vmem:[%s228 + $0x38] sm:$0xff]
    %v1207 = vld [vmem:[%s228 + $0x40] sm:$0xff]
    %v1208 = vld [vmem:[%s228 + $0x48] sm:$0xff]
    %v1209 = vld [vmem:[%s228 + $0x50] sm:$0xff]
    %v1210 = vld [vmem:[%s228 + $0x58] sm:$0xff]
    %v1211 = vld [vmem:[%s228 + $0x60] sm:$0xff]
    %v1212 = vld [vmem:[%s228 + $0x68] sm:$0xff]
    %v1213 = vld [vmem:[%s228 + $0x70] sm:$0xff]
    %v1214 = vld [vmem:[%s228 + $0x78] sm:$0xff]
    %v1215 = vmul.f32 %v506, %v1199
    %v1216 = vmul.f32 %v508, %v1200
    %v1217 = vmul.f32 %v510, %v1201
    %v1218 = vmul.f32 %v512, %v1202
    %v1219 = vmul.f32 %v514, %v1203
    %v1220 = vmul.f32 %v516, %v1204
    %v1221 = vmul.f32 %v518, %v1205
    %v1222 = vmul.f32 %v520, %v1206
    %v1223 = vmul.f32 %v522, %v1207
    %v1224 = vmul.f32 %v524, %v1208
    %v1225 = vmul.f32 %v526, %v1209
    %v1226 = vmul.f32 %v528, %v1210
    %v1227 = vmul.f32 %v530, %v1211
    %v1228 = vmul.f32 %v532, %v1212
    %v1229 = vmul.f32 %v534, %v1213
    %v1230 = vmul.f32 %v536, %v1214
    %s1231 = scalar_lea.vmem [#allocation7], 768
    %v1232 = vld [vmem:[%s1231] sm:$0xff]
    %v1233 = vld [vmem:[%s1231 + $0x8] sm:$0xff]
    %v1234 = vld [vmem:[%s1231 + $0x10] sm:$0xff]
    %v1235 = vld [vmem:[%s1231 + $0x18] sm:$0xff]
    %v1236 = vld [vmem:[%s1231 + $0x20] sm:$0xff]
    %v1237 = vld [vmem:[%s1231 + $0x28] sm:$0xff]
    %v1238 = vld [vmem:[%s1231 + $0x30] sm:$0xff]
    %v1239 = vld [vmem:[%s1231 + $0x38] sm:$0xff]
    %v1240 = vld [vmem:[%s1231 + $0x40] sm:$0xff]
    %v1241 = vld [vmem:[%s1231 + $0x48] sm:$0xff]
    %v1242 = vld [vmem:[%s1231 + $0x50] sm:$0xff]
    %v1243 = vld [vmem:[%s1231 + $0x58] sm:$0xff]
    %v1244 = vld [vmem:[%s1231 + $0x60] sm:$0xff]
    %v1245 = vld [vmem:[%s1231 + $0x68] sm:$0xff]
    %v1246 = vld [vmem:[%s1231 + $0x70] sm:$0xff]
    %v1247 = vld [vmem:[%s1231 + $0x78] sm:$0xff]
    %v1248 = vmul.f32 %v1215, %v1232
    %v1249 = vmul.f32 %v1216, %v1233
    %v1250 = vmul.f32 %v1217, %v1234
    %v1251 = vmul.f32 %v1218, %v1235
    %v1252 = vmul.f32 %v1219, %v1236
    %v1253 = vmul.f32 %v1220, %v1237
    %v1254 = vmul.f32 %v1221, %v1238
    %v1255 = vmul.f32 %v1222, %v1239
    %v1256 = vmul.f32 %v1223, %v1240
    %v1257 = vmul.f32 %v1224, %v1241
    %v1258 = vmul.f32 %v1225, %v1242
    %v1259 = vmul.f32 %v1226, %v1243
    %v1260 = vmul.f32 %v1227, %v1244
    %v1261 = vmul.f32 %v1228, %v1245
    %v1262 = vmul.f32 %v1229, %v1246
    %v1263 = vmul.f32 %v1230, %v1247
    %1264 = vadd.xlane.f32.xlu0 %v1248
    %v1265 = vpop.xlane.xlu0 %1264
    %1266 = vadd.xlane.f32.xlu0 %v1249
    %v1267 = vpop.xlane.xlu0 %1266
    %1268 = vadd.xlane.f32.xlu0 %v1250
    %v1269 = vpop.xlane.xlu0 %1268
    %1270 = vadd.xlane.f32.xlu0 %v1251
    %v1271 = vpop.xlane.xlu0 %1270
    %1272 = vadd.xlane.f32.xlu0 %v1252
    %v1273 = vpop.xlane.xlu0 %1272
    %1274 = vadd.xlane.f32.xlu0 %v1253
    %v1275 = vpop.xlane.xlu0 %1274
    %1276 = vadd.xlane.f32.xlu0 %v1254
    %v1277 = vpop.xlane.xlu0 %1276
    %1278 = vadd.xlane.f32.xlu0 %v1255
    %v1279 = vpop.xlane.xlu0 %1278
    %1280 = vadd.xlane.f32.xlu0 %v1256
    %v1281 = vpop.xlane.xlu0 %1280
    %1282 = vadd.xlane.f32.xlu0 %v1257
    %v1283 = vpop.xlane.xlu0 %1282
    %1284 = vadd.xlane.f32.xlu0 %v1258
    %v1285 = vpop.xlane.xlu0 %1284
    %1286 = vadd.xlane.f32.xlu0 %v1259
    %v1287 = vpop.xlane.xlu0 %1286
    %1288 = vadd.xlane.f32.xlu0 %v1260
    %v1289 = vpop.xlane.xlu0 %1288
    %1290 = vadd.xlane.f32.xlu0 %v1261
    %v1291 = vpop.xlane.xlu0 %1290
    %1292 = vadd.xlane.f32.xlu0 %v1262
    %v1293 = vpop.xlane.xlu0 %1292
    %1294 = vadd.xlane.f32.xlu0 %v1263
    %v1295 = vpop.xlane.xlu0 %1294
    %s1296 = scalar_lea.vmem [#allocation7], 896
    %v1297 = vld [vmem:[%s1296] sm:$0xff]
    %v1298 = vld [vmem:[%s1296 + $0x8] sm:$0xff]
    %v1299 = vld [vmem:[%s1296 + $0x10] sm:$0xff]
    %v1300 = vld [vmem:[%s1296 + $0x18] sm:$0xff]
    %v1301 = vld [vmem:[%s1296 + $0x20] sm:$0xff]
    %v1302 = vld [vmem:[%s1296 + $0x28] sm:$0xff]
    %v1303 = vld [vmem:[%s1296 + $0x30] sm:$0xff]
    %v1304 = vld [vmem:[%s1296 + $0x38] sm:$0xff]
    %v1305 = vld [vmem:[%s1296 + $0x40] sm:$0xff]
    %v1306 = vld [vmem:[%s1296 + $0x48] sm:$0xff]
    %v1307 = vld [vmem:[%s1296 + $0x50] sm:$0xff]
    %v1308 = vld [vmem:[%s1296 + $0x58] sm:$0xff]
    %v1309 = vld [vmem:[%s1296 + $0x60] sm:$0xff]
    %v1310 = vld [vmem:[%s1296 + $0x68] sm:$0xff]
    %v1311 = vld [vmem:[%s1296 + $0x70] sm:$0xff]
    %v1312 = vld [vmem:[%s1296 + $0x78] sm:$0xff]
    %v1313 = vmul.f32 %v1215, %v1297
    %v1314 = vmul.f32 %v1216, %v1298
    %v1315 = vmul.f32 %v1217, %v1299
    %v1316 = vmul.f32 %v1218, %v1300
    %v1317 = vmul.f32 %v1219, %v1301
    %v1318 = vmul.f32 %v1220, %v1302
    %v1319 = vmul.f32 %v1221, %v1303
    %v1320 = vmul.f32 %v1222, %v1304
    %v1321 = vmul.f32 %v1223, %v1305
    %v1322 = vmul.f32 %v1224, %v1306
    %v1323 = vmul.f32 %v1225, %v1307
    %v1324 = vmul.f32 %v1226, %v1308
    %v1325 = vmul.f32 %v1227, %v1309
    %v1326 = vmul.f32 %v1228, %v1310
    %v1327 = vmul.f32 %v1229, %v1311
    %v1328 = vmul.f32 %v1230, %v1312
    %1329 = vadd.xlane.f32.xlu0 %v1313
    %v1330 = vpop.xlane.xlu0 %1329
    %1331 = vadd.xlane.f32.xlu0 %v1314
    %v1332 = vpop.xlane.xlu0 %1331
    %1333 = vadd.xlane.f32.xlu0 %v1315
    %v1334 = vpop.xlane.xlu0 %1333
    %1335 = vadd.xlane.f32.xlu0 %v1316
    %v1336 = vpop.xlane.xlu0 %1335
    %1337 = vadd.xlane.f32.xlu0 %v1317
    %v1338 = vpop.xlane.xlu0 %1337
    %1339 = vadd.xlane.f32.xlu0 %v1318
    %v1340 = vpop.xlane.xlu0 %1339
    %1341 = vadd.xlane.f32.xlu0 %v1319
    %v1342 = vpop.xlane.xlu0 %1341
    %1343 = vadd.xlane.f32.xlu0 %v1320
    %v1344 = vpop.xlane.xlu0 %1343
    %1345 = vadd.xlane.f32.xlu0 %v1321
    %v1346 = vpop.xlane.xlu0 %1345
    %1347 = vadd.xlane.f32.xlu0 %v1322
    %v1348 = vpop.xlane.xlu0 %1347
    %1349 = vadd.xlane.f32.xlu0 %v1323
    %v1350 = vpop.xlane.xlu0 %1349
    %1351 = vadd.xlane.f32.xlu0 %v1324
    %v1352 = vpop.xlane.xlu0 %1351
    %1353 = vadd.xlane.f32.xlu0 %v1325
    %v1354 = vpop.xlane.xlu0 %1353
    %1355 = vadd.xlane.f32.xlu0 %v1326
    %v1356 = vpop.xlane.xlu0 %1355
    %1357 = vadd.xlane.f32.xlu0 %v1327
    %v1358 = vpop.xlane.xlu0 %1357
    %1359 = vadd.xlane.f32.xlu0 %v1328
    %v1360 = vpop.xlane.xlu0 %1359
    %v1361 = vld [vmem:[%s1] sm:$0xff]
    %v1378 = vlaneseq
    %v1379 = vshrl.u32 %v1378, 7
    %v1380 = vsub.s32 %v602, %v1379
    %v1381 = vrot.slane %v779, %v1380
    %v1382 = vlaneseq
    %v1383 = vshrl.u32 %v1382, 7
    %v1384 = vsub.s32 %v607, %v1383
    %v1385 = vrot.slane %v781, %v1384
    %v1386 = vsel %vm612, %v1385, %v1381
    %v1387 = vlaneseq
    %v1388 = vshrl.u32 %v1387, 7
    %v1389 = vsub.s32 %v614, %v1388
    %v1390 = vrot.slane %v783, %v1389
    %v1391 = vsel %vm619, %v1390, %v1386
    %v1392 = vlaneseq
    %v1393 = vshrl.u32 %v1392, 7
    %v1394 = vsub.s32 %v621, %v1393
    %v1395 = vrot.slane %v785, %v1394
    %v1396 = vsel %vm626, %v1395, %v1391
    %v1397 = vlaneseq
    %v1398 = vshrl.u32 %v1397, 7
    %v1399 = vsub.s32 %v628, %v1398
    %v1400 = vrot.slane %v787, %v1399
    %v1401 = vsel %vm633, %v1400, %v1396
    %v1402 = vlaneseq
    %v1403 = vshrl.u32 %v1402, 7
    %v1404 = vsub.s32 %v635, %v1403
    %v1405 = vrot.slane %v789, %v1404
    %v1406 = vsel %vm640, %v1405, %v1401
    %v1407 = vlaneseq
    %v1408 = vshrl.u32 %v1407, 7
    %v1409 = vsub.s32 %v642, %v1408
    %v1410 = vrot.slane %v791, %v1409
    %v1411 = vsel %vm647, %v1410, %v1406
    %v1412 = vlaneseq
    %v1413 = vshrl.u32 %v1412, 7
    %v1414 = vsub.s32 %v649, %v1413
    %v1415 = vrot.slane %v793, %v1414
    %v1416 = vsel %vm654, %v1415, %v1411
    %v1417 = vlaneseq
    %v1418 = vshrl.u32 %v1417, 7
    %v1419 = vsub.s32 %v656, %v1418
    %v1420 = vrot.slane %v795, %v1419
    %v1421 = vsel %vm661, %v1420, %v1416
    %v1422 = vlaneseq
    %v1423 = vshrl.u32 %v1422, 7
    %v1424 = vsub.s32 %v663, %v1423
    %v1425 = vrot.slane %v797, %v1424
    %v1426 = vsel %vm668, %v1425, %v1421
    %v1427 = vlaneseq
    %v1428 = vshrl.u32 %v1427, 7
    %v1429 = vsub.s32 %v670, %v1428
    %v1430 = vrot.slane %v799, %v1429
    %v1431 = vsel %vm675, %v1430, %v1426
    %v1432 = vlaneseq
    %v1433 = vshrl.u32 %v1432, 7
    %v1434 = vsub.s32 %v677, %v1433
    %v1435 = vrot.slane %v801, %v1434
    %v1436 = vsel %vm682, %v1435, %v1431
    %v1437 = vlaneseq
    %v1438 = vshrl.u32 %v1437, 7
    %v1439 = vsub.s32 %v684, %v1438
    %v1440 = vrot.slane %v803, %v1439
    %v1441 = vsel %vm689, %v1440, %v1436
    %v1442 = vlaneseq
    %v1443 = vshrl.u32 %v1442, 7
    %v1444 = vsub.s32 %v691, %v1443
    %v1445 = vrot.slane %v805, %v1444
    %v1446 = vsel %vm696, %v1445, %v1441
    %v1447 = vlaneseq
    %v1448 = vshrl.u32 %v1447, 7
    %v1449 = vsub.s32 %v698, %v1448
    %v1450 = vrot.slane %v807, %v1449
    %v1451 = vsel %vm703, %v1450, %v1446
    %v1452 = vlaneseq
    %v1453 = vshrl.u32 %v1452, 7
    %v1454 = vsub.s32 %v705, %v1453
    %v1455 = vrot.slane %v809, %v1454
    %v1456 = vsel %vm710, %v1455, %v1451
    %v1474 = vlaneseq
    %v1475 = vshrl.u32 %v1474, 7
    %v1476 = vsub.s32 %v602, %v1475
    %v1477 = vrot.slane %v844, %v1476
    %v1478 = vlaneseq
    %v1479 = vshrl.u32 %v1478, 7
    %v1480 = vsub.s32 %v607, %v1479
    %v1481 = vrot.slane %v846, %v1480
    %v1482 = vsel %vm612, %v1481, %v1477
    %v1483 = vlaneseq
    %v1484 = vshrl.u32 %v1483, 7
    %v1485 = vsub.s32 %v614, %v1484
    %v1486 = vrot.slane %v848, %v1485
    %v1487 = vsel %vm619, %v1486, %v1482
    %v1488 = vlaneseq
    %v1489 = vshrl.u32 %v1488, 7
    %v1490 = vsub.s32 %v621, %v1489
    %v1491 = vrot.slane %v850, %v1490
    %v1492 = vsel %vm626, %v1491, %v1487
    %v1493 = vlaneseq
    %v1494 = vshrl.u32 %v1493, 7
    %v1495 = vsub.s32 %v628, %v1494
    %v1496 = vrot.slane %v852, %v1495
    %v1497 = vsel %vm633, %v1496, %v1492
    %v1498 = vlaneseq
    %v1499 = vshrl.u32 %v1498, 7
    %v1500 = vsub.s32 %v635, %v1499
    %v1501 = vrot.slane %v854, %v1500
    %v1502 = vsel %vm640, %v1501, %v1497
    %v1503 = vlaneseq
    %v1504 = vshrl.u32 %v1503, 7
    %v1505 = vsub.s32 %v642, %v1504
    %v1506 = vrot.slane %v856, %v1505
    %v1507 = vsel %vm647, %v1506, %v1502
    %v1508 = vlaneseq
    %v1509 = vshrl.u32 %v1508, 7
    %v1510 = vsub.s32 %v649, %v1509
    %v1511 = vrot.slane %v858, %v1510
    %v1512 = vsel %vm654, %v1511, %v1507
    %v1513 = vlaneseq
    %v1514 = vshrl.u32 %v1513, 7
    %v1515 = vsub.s32 %v656, %v1514
    %v1516 = vrot.slane %v860, %v1515
    %v1517 = vsel %vm661, %v1516, %v1512
    %v1518 = vlaneseq
    %v1519 = vshrl.u32 %v1518, 7
    %v1520 = vsub.s32 %v663, %v1519
    %v1521 = vrot.slane %v862, %v1520
    %v1522 = vsel %vm668, %v1521, %v1517
    %v1523 = vlaneseq
    %v1524 = vshrl.u32 %v1523, 7
    %v1525 = vsub.s32 %v670, %v1524
    %v1526 = vrot.slane %v864, %v1525
    %v1527 = vsel %vm675, %v1526, %v1522
    %v1528 = vlaneseq
    %v1529 = vshrl.u32 %v1528, 7
    %v1530 = vsub.s32 %v677, %v1529
    %v1531 = vrot.slane %v866, %v1530
    %v1532 = vsel %vm682, %v1531, %v1527
    %v1533 = vlaneseq
    %v1534 = vshrl.u32 %v1533, 7
    %v1535 = vsub.s32 %v684, %v1534
    %v1536 = vrot.slane %v868, %v1535
    %v1537 = vsel %vm689, %v1536, %v1532
    %v1538 = vlaneseq
    %v1539 = vshrl.u32 %v1538, 7
    %v1540 = vsub.s32 %v691, %v1539
    %v1541 = vrot.slane %v870, %v1540
    %v1542 = vsel %vm696, %v1541, %v1537
    %v1543 = vlaneseq
    %v1544 = vshrl.u32 %v1543, 7
    %v1545 = vsub.s32 %v698, %v1544
    %v1546 = vrot.slane %v872, %v1545
    %v1547 = vsel %vm703, %v1546, %v1542
    %v1548 = vlaneseq
    %v1549 = vshrl.u32 %v1548, 7
    %v1550 = vsub.s32 %v705, %v1549
    %v1551 = vrot.slane %v874, %v1550
    %v1552 = vsel %vm710, %v1551, %v1547
    %v1570 = vlaneseq
    %v1571 = vshrl.u32 %v1570, 7
    %v1572 = vsub.s32 %v602, %v1571
    %v1573 = vrot.slane %v941, %v1572
    %v1574 = vlaneseq
    %v1575 = vshrl.u32 %v1574, 7
    %v1576 = vsub.s32 %v607, %v1575
    %v1577 = vrot.slane %v943, %v1576
    %v1578 = vsel %vm612, %v1577, %v1573
    %v1579 = vlaneseq
    %v1580 = vshrl.u32 %v1579, 7
    %v1581 = vsub.s32 %v614, %v1580
    %v1582 = vrot.slane %v945, %v1581
    %v1583 = vsel %vm619, %v1582, %v1578
    %v1584 = vlaneseq
    %v1585 = vshrl.u32 %v1584, 7
    %v1586 = vsub.s32 %v621, %v1585
    %v1587 = vrot.slane %v947, %v1586
    %v1588 = vsel %vm626, %v1587, %v1583
    %v1589 = vlaneseq
    %v1590 = vshrl.u32 %v1589, 7
    %v1591 = vsub.s32 %v628, %v1590
    %v1592 = vrot.slane %v949, %v1591
    %v1593 = vsel %vm633, %v1592, %v1588
    %v1594 = vlaneseq
    %v1595 = vshrl.u32 %v1594, 7
    %v1596 = vsub.s32 %v635, %v1595
    %v1597 = vrot.slane %v951, %v1596
    %v1598 = vsel %vm640, %v1597, %v1593
    %v1599 = vlaneseq
    %v1600 = vshrl.u32 %v1599, 7
    %v1601 = vsub.s32 %v642, %v1600
    %v1602 = vrot.slane %v953, %v1601
    %v1603 = vsel %vm647, %v1602, %v1598
    %v1604 = vlaneseq
    %v1605 = vshrl.u32 %v1604, 7
    %v1606 = vsub.s32 %v649, %v1605
    %v1607 = vrot.slane %v955, %v1606
    %v1608 = vsel %vm654, %v1607, %v1603
    %v1609 = vlaneseq
    %v1610 = vshrl.u32 %v1609, 7
    %v1611 = vsub.s32 %v656, %v1610
    %v1612 = vrot.slane %v957, %v1611
    %v1613 = vsel %vm661, %v1612, %v1608
    %v1614 = vlaneseq
    %v1615 = vshrl.u32 %v1614, 7
    %v1616 = vsub.s32 %v663, %v1615
    %v1617 = vrot.slane %v959, %v1616
    %v1618 = vsel %vm668, %v1617, %v1613
    %v1619 = vlaneseq
    %v1620 = vshrl.u32 %v1619, 7
    %v1621 = vsub.s32 %v670, %v1620
    %v1622 = vrot.slane %v961, %v1621
    %v1623 = vsel %vm675, %v1622, %v1618
    %v1624 = vlaneseq
    %v1625 = vshrl.u32 %v1624, 7
    %v1626 = vsub.s32 %v677, %v1625
    %v1627 = vrot.slane %v963, %v1626
    %v1628 = vsel %vm682, %v1627, %v1623
    %v1629 = vlaneseq
    %v1630 = vshrl.u32 %v1629, 7
    %v1631 = vsub.s32 %v684, %v1630
    %v1632 = vrot.slane %v965, %v1631
    %v1633 = vsel %vm689, %v1632, %v1628
    %v1634 = vlaneseq
    %v1635 = vshrl.u32 %v1634, 7
    %v1636 = vsub.s32 %v691, %v1635
    %v1637 = vrot.slane %v967, %v1636
    %v1638 = vsel %vm696, %v1637, %v1633
    %v1639 = vlaneseq
    %v1640 = vshrl.u32 %v1639, 7
    %v1641 = vsub.s32 %v698, %v1640
    %v1642 = vrot.slane %v969, %v1641
    %v1643 = vsel %vm703, %v1642, %v1638
    %v1644 = vlaneseq
    %v1645 = vshrl.u32 %v1644, 7
    %v1646 = vsub.s32 %v705, %v1645
    %v1647 = vrot.slane %v971, %v1646
    %v1648 = vsel %vm710, %v1647, %v1643
    %v1666 = vlaneseq
    %v1667 = vshrl.u32 %v1666, 7
    %v1668 = vsub.s32 %v602, %v1667
    %v1669 = vrot.slane %v1006, %v1668
    %v1670 = vlaneseq
    %v1671 = vshrl.u32 %v1670, 7
    %v1672 = vsub.s32 %v607, %v1671
    %v1673 = vrot.slane %v1008, %v1672
    %v1674 = vsel %vm612, %v1673, %v1669
    %v1675 = vlaneseq
    %v1676 = vshrl.u32 %v1675, 7
    %v1677 = vsub.s32 %v614, %v1676
    %v1678 = vrot.slane %v1010, %v1677
    %v1679 = vsel %vm619, %v1678, %v1674
    %v1680 = vlaneseq
    %v1681 = vshrl.u32 %v1680, 7
    %v1682 = vsub.s32 %v621, %v1681
    %v1683 = vrot.slane %v1012, %v1682
    %v1684 = vsel %vm626, %v1683, %v1679
    %v1685 = vlaneseq
    %v1686 = vshrl.u32 %v1685, 7
    %v1687 = vsub.s32 %v628, %v1686
    %v1688 = vrot.slane %v1014, %v1687
    %v1689 = vsel %vm633, %v1688, %v1684
    %v1690 = vlaneseq
    %v1691 = vshrl.u32 %v1690, 7
    %v1692 = vsub.s32 %v635, %v1691
    %v1693 = vrot.slane %v1016, %v1692
    %v1694 = vsel %vm640, %v1693, %v1689
    %v1695 = vlaneseq
    %v1696 = vshrl.u32 %v1695, 7
    %v1697 = vsub.s32 %v642, %v1696
    %v1698 = vrot.slane %v1018, %v1697
    %v1699 = vsel %vm647, %v1698, %v1694
    %v1700 = vlaneseq
    %v1701 = vshrl.u32 %v1700, 7
    %v1702 = vsub.s32 %v649, %v1701
    %v1703 = vrot.slane %v1020, %v1702
    %v1704 = vsel %vm654, %v1703, %v1699
    %v1705 = vlaneseq
    %v1706 = vshrl.u32 %v1705, 7
    %v1707 = vsub.s32 %v656, %v1706
    %v1708 = vrot.slane %v1022, %v1707
    %v1709 = vsel %vm661, %v1708, %v1704
    %v1710 = vlaneseq
    %v1711 = vshrl.u32 %v1710, 7
    %v1712 = vsub.s32 %v663, %v1711
    %v1713 = vrot.slane %v1024, %v1712
    %v1714 = vsel %vm668, %v1713, %v1709
    %v1715 = vlaneseq
    %v1716 = vshrl.u32 %v1715, 7
    %v1717 = vsub.s32 %v670, %v1716
    %v1718 = vrot.slane %v1026, %v1717
    %v1719 = vsel %vm675, %v1718, %v1714
    %v1720 = vlaneseq
    %v1721 = vshrl.u32 %v1720, 7
    %v1722 = vsub.s32 %v677, %v1721
    %v1723 = vrot.slane %v1028, %v1722
    %v1724 = vsel %vm682, %v1723, %v1719
    %v1725 = vlaneseq
    %v1726 = vshrl.u32 %v1725, 7
    %v1727 = vsub.s32 %v684, %v1726
    %v1728 = vrot.slane %v1030, %v1727
    %v1729 = vsel %vm689, %v1728, %v1724
    %v1730 = vlaneseq
    %v1731 = vshrl.u32 %v1730, 7
    %v1732 = vsub.s32 %v691, %v1731
    %v1733 = vrot.slane %v1032, %v1732
    %v1734 = vsel %vm696, %v1733, %v1729
    %v1735 = vlaneseq
    %v1736 = vshrl.u32 %v1735, 7
    %v1737 = vsub.s32 %v698, %v1736
    %v1738 = vrot.slane %v1034, %v1737
    %v1739 = vsel %vm703, %v1738, %v1734
    %v1740 = vlaneseq
    %v1741 = vshrl.u32 %v1740, 7
    %v1742 = vsub.s32 %v705, %v1741
    %v1743 = vrot.slane %v1036, %v1742
    %v1744 = vsel %vm710, %v1743, %v1739
    %v1762 = vlaneseq
    %v1763 = vshrl.u32 %v1762, 7
    %v1764 = vsub.s32 %v602, %v1763
    %v1765 = vrot.slane %v1071, %v1764
    %v1766 = vlaneseq
    %v1767 = vshrl.u32 %v1766, 7
    %v1768 = vsub.s32 %v607, %v1767
    %v1769 = vrot.slane %v1073, %v1768
    %v1770 = vsel %vm612, %v1769, %v1765
    %v1771 = vlaneseq
    %v1772 = vshrl.u32 %v1771, 7
    %v1773 = vsub.s32 %v614, %v1772
    %v1774 = vrot.slane %v1075, %v1773
    %v1775 = vsel %vm619, %v1774, %v1770
    %v1776 = vlaneseq
    %v1777 = vshrl.u32 %v1776, 7
    %v1778 = vsub.s32 %v621, %v1777
    %v1779 = vrot.slane %v1077, %v1778
    %v1780 = vsel %vm626, %v1779, %v1775
    %v1781 = vlaneseq
    %v1782 = vshrl.u32 %v1781, 7
    %v1783 = vsub.s32 %v628, %v1782
    %v1784 = vrot.slane %v1079, %v1783
    %v1785 = vsel %vm633, %v1784, %v1780
    %v1786 = vlaneseq
    %v1787 = vshrl.u32 %v1786, 7
    %v1788 = vsub.s32 %v635, %v1787
    %v1789 = vrot.slane %v1081, %v1788
    %v1790 = vsel %vm640, %v1789, %v1785
    %v1791 = vlaneseq
    %v1792 = vshrl.u32 %v1791, 7
    %v1793 = vsub.s32 %v642, %v1792
    %v1794 = vrot.slane %v1083, %v1793
    %v1795 = vsel %vm647, %v1794, %v1790
    %v1796 = vlaneseq
    %v1797 = vshrl.u32 %v1796, 7
    %v1798 = vsub.s32 %v649, %v1797
    %v1799 = vrot.slane %v1085, %v1798
    %v1800 = vsel %vm654, %v1799, %v1795
    %v1801 = vlaneseq
    %v1802 = vshrl.u32 %v1801, 7
    %v1803 = vsub.s32 %v656, %v1802
    %v1804 = vrot.slane %v1087, %v1803
    %v1805 = vsel %vm661, %v1804, %v1800
    %v1806 = vlaneseq
    %v1807 = vshrl.u32 %v1806, 7
    %v1808 = vsub.s32 %v663, %v1807
    %v1809 = vrot.slane %v1089, %v1808
    %v1810 = vsel %vm668, %v1809, %v1805
    %v1811 = vlaneseq
    %v1812 = vshrl.u32 %v1811, 7
    %v1813 = vsub.s32 %v670, %v1812
    %v1814 = vrot.slane %v1091, %v1813
    %v1815 = vsel %vm675, %v1814, %v1810
    %v1816 = vlaneseq
    %v1817 = vshrl.u32 %v1816, 7
    %v1818 = vsub.s32 %v677, %v1817
    %v1819 = vrot.slane %v1093, %v1818
    %v1820 = vsel %vm682, %v1819, %v1815
    %v1821 = vlaneseq
    %v1822 = vshrl.u32 %v1821, 7
    %v1823 = vsub.s32 %v684, %v1822
    %v1824 = vrot.slane %v1095, %v1823
    %v1825 = vsel %vm689, %v1824, %v1820
    %v1826 = vlaneseq
    %v1827 = vshrl.u32 %v1826, 7
    %v1828 = vsub.s32 %v691, %v1827
    %v1829 = vrot.slane %v1097, %v1828
    %v1830 = vsel %vm696, %v1829, %v1825
    %v1831 = vlaneseq
    %v1832 = vshrl.u32 %v1831, 7
    %v1833 = vsub.s32 %v698, %v1832
    %v1834 = vrot.slane %v1099, %v1833
    %v1835 = vsel %vm703, %v1834, %v1830
    %v1836 = vlaneseq
    %v1837 = vshrl.u32 %v1836, 7
    %v1838 = vsub.s32 %v705, %v1837
    %v1839 = vrot.slane %v1101, %v1838
    %v1840 = vsel %vm710, %v1839, %v1835
    %v1858 = vlaneseq
    %v1859 = vshrl.u32 %v1858, 7
    %v1860 = vsub.s32 %v602, %v1859
    %v1861 = vrot.slane %v1168, %v1860
    %v1862 = vlaneseq
    %v1863 = vshrl.u32 %v1862, 7
    %v1864 = vsub.s32 %v607, %v1863
    %v1865 = vrot.slane %v1170, %v1864
    %v1866 = vsel %vm612, %v1865, %v1861
    %v1867 = vlaneseq
    %v1868 = vshrl.u32 %v1867, 7
    %v1869 = vsub.s32 %v614, %v1868
    %v1870 = vrot.slane %v1172, %v1869
    %v1871 = vsel %vm619, %v1870, %v1866
    %v1872 = vlaneseq
    %v1873 = vshrl.u32 %v1872, 7
    %v1874 = vsub.s32 %v621, %v1873
    %v1875 = vrot.slane %v1174, %v1874
    %v1876 = vsel %vm626, %v1875, %v1871
    %v1877 = vlaneseq
    %v1878 = vshrl.u32 %v1877, 7
    %v1879 = vsub.s32 %v628, %v1878
    %v1880 = vrot.slane %v1176, %v1879
    %v1881 = vsel %vm633, %v1880, %v1876
    %v1882 = vlaneseq
    %v1883 = vshrl.u32 %v1882, 7
    %v1884 = vsub.s32 %v635, %v1883
    %v1885 = vrot.slane %v1178, %v1884
    %v1886 = vsel %vm640, %v1885, %v1881
    %v1887 = vlaneseq
    %v1888 = vshrl.u32 %v1887, 7
    %v1889 = vsub.s32 %v642, %v1888
    %v1890 = vrot.slane %v1180, %v1889
    %v1891 = vsel %vm647, %v1890, %v1886
    %v1892 = vlaneseq
    %v1893 = vshrl.u32 %v1892, 7
    %v1894 = vsub.s32 %v649, %v1893
    %v1895 = vrot.slane %v1182, %v1894
    %v1896 = vsel %vm654, %v1895, %v1891
    %v1897 = vlaneseq
    %v1898 = vshrl.u32 %v1897, 7
    %v1899 = vsub.s32 %v656, %v1898
    %v1900 = vrot.slane %v1184, %v1899
    %v1901 = vsel %vm661, %v1900, %v1896
    %v1902 = vlaneseq
    %v1903 = vshrl.u32 %v1902, 7
    %v1904 = vsub.s32 %v663, %v1903
    %v1905 = vrot.slane %v1186, %v1904
    %v1906 = vsel %vm668, %v1905, %v1901
    %v1907 = vlaneseq
    %v1908 = vshrl.u32 %v1907, 7
    %v1909 = vsub.s32 %v670, %v1908
    %v1910 = vrot.slane %v1188, %v1909
    %v1911 = vsel %vm675, %v1910, %v1906
    %v1912 = vlaneseq
    %v1913 = vshrl.u32 %v1912, 7
    %v1914 = vsub.s32 %v677, %v1913
    %v1915 = vrot.slane %v1190, %v1914
    %v1916 = vsel %vm682, %v1915, %v1911
    %v1917 = vlaneseq
    %v1918 = vshrl.u32 %v1917, 7
    %v1919 = vsub.s32 %v684, %v1918
    %v1920 = vrot.slane %v1192, %v1919
    %v1921 = vsel %vm689, %v1920, %v1916
    %v1922 = vlaneseq
    %v1923 = vshrl.u32 %v1922, 7
    %v1924 = vsub.s32 %v691, %v1923
    %v1925 = vrot.slane %v1194, %v1924
    %v1926 = vsel %vm696, %v1925, %v1921
    %v1927 = vlaneseq
    %v1928 = vshrl.u32 %v1927, 7
    %v1929 = vsub.s32 %v698, %v1928
    %v1930 = vrot.slane %v1196, %v1929
    %v1931 = vsel %vm703, %v1930, %v1926
    %v1932 = vlaneseq
    %v1933 = vshrl.u32 %v1932, 7
    %v1934 = vsub.s32 %v705, %v1933
    %v1935 = vrot.slane %v1198, %v1934
    %v1936 = vsel %vm710, %v1935, %v1931
    %v1954 = vlaneseq
    %v1955 = vshrl.u32 %v1954, 7
    %v1956 = vsub.s32 %v602, %v1955
    %v1957 = vrot.slane %v1265, %v1956
    %v1958 = vlaneseq
    %v1959 = vshrl.u32 %v1958, 7
    %v1960 = vsub.s32 %v607, %v1959
    %v1961 = vrot.slane %v1267, %v1960
    %v1962 = vsel %vm612, %v1961, %v1957
    %v1963 = vlaneseq
    %v1964 = vshrl.u32 %v1963, 7
    %v1965 = vsub.s32 %v614, %v1964
    %v1966 = vrot.slane %v1269, %v1965
    %v1967 = vsel %vm619, %v1966, %v1962
    %v1968 = vlaneseq
    %v1969 = vshrl.u32 %v1968, 7
    %v1970 = vsub.s32 %v621, %v1969
    %v1971 = vrot.slane %v1271, %v1970
    %v1972 = vsel %vm626, %v1971, %v1967
    %v1973 = vlaneseq
    %v1974 = vshrl.u32 %v1973, 7
    %v1975 = vsub.s32 %v628, %v1974
    %v1976 = vrot.slane %v1273, %v1975
    %v1977 = vsel %vm633, %v1976, %v1972
    %v1978 = vlaneseq
    %v1979 = vshrl.u32 %v1978, 7
    %v1980 = vsub.s32 %v635, %v1979
    %v1981 = vrot.slane %v1275, %v1980
    %v1982 = vsel %vm640, %v1981, %v1977
    %v1983 = vlaneseq
    %v1984 = vshrl.u32 %v1983, 7
    %v1985 = vsub.s32 %v642, %v1984
    %v1986 = vrot.slane %v1277, %v1985
    %v1987 = vsel %vm647, %v1986, %v1982
    %v1988 = vlaneseq
    %v1989 = vshrl.u32 %v1988, 7
    %v1990 = vsub.s32 %v649, %v1989
    %v1991 = vrot.slane %v1279, %v1990
    %v1992 = vsel %vm654, %v1991, %v1987
    %v1993 = vlaneseq
    %v1994 = vshrl.u32 %v1993, 7
    %v1995 = vsub.s32 %v656, %v1994
    %v1996 = vrot.slane %v1281, %v1995
    %v1997 = vsel %vm661, %v1996, %v1992
    %v1998 = vlaneseq
    %v1999 = vshrl.u32 %v1998, 7
    %v2000 = vsub.s32 %v663, %v1999
    %v2001 = vrot.slane %v1283, %v2000
    %v2002 = vsel %vm668, %v2001, %v1997
    %v2003 = vlaneseq
    %v2004 = vshrl.u32 %v2003, 7
    %v2005 = vsub.s32 %v670, %v2004
    %v2006 = vrot.slane %v1285, %v2005
    %v2007 = vsel %vm675, %v2006, %v2002
    %v2008 = vlaneseq
    %v2009 = vshrl.u32 %v2008, 7
    %v2010 = vsub.s32 %v677, %v2009
    %v2011 = vrot.slane %v1287, %v2010
    %v2012 = vsel %vm682, %v2011, %v2007
    %v2013 = vlaneseq
    %v2014 = vshrl.u32 %v2013, 7
    %v2015 = vsub.s32 %v684, %v2014
    %v2016 = vrot.slane %v1289, %v2015
    %v2017 = vsel %vm689, %v2016, %v2012
    %v2018 = vlaneseq
    %v2019 = vshrl.u32 %v2018, 7
    %v2020 = vsub.s32 %v691, %v2019
    %v2021 = vrot.slane %v1291, %v2020
    %v2022 = vsel %vm696, %v2021, %v2017
    %v2023 = vlaneseq
    %v2024 = vshrl.u32 %v2023, 7
    %v2025 = vsub.s32 %v698, %v2024
    %v2026 = vrot.slane %v1293, %v2025
    %v2027 = vsel %vm703, %v2026, %v2022
    %v2028 = vlaneseq
    %v2029 = vshrl.u32 %v2028, 7
    %v2030 = vsub.s32 %v705, %v2029
    %v2031 = vrot.slane %v1295, %v2030
    %v2032 = vsel %vm710, %v2031, %v2027
    %v2050 = vlaneseq
    %v2051 = vshrl.u32 %v2050, 7
    %v2052 = vsub.s32 %v602, %v2051
    %v2053 = vrot.slane %v1330, %v2052
    %v2054 = vlaneseq
    %v2055 = vshrl.u32 %v2054, 7
    %v2056 = vsub.s32 %v607, %v2055
    %v2057 = vrot.slane %v1332, %v2056
    %v2058 = vsel %vm612, %v2057, %v2053
    %v2059 = vlaneseq
    %v2060 = vshrl.u32 %v2059, 7
    %v2061 = vsub.s32 %v614, %v2060
    %v2062 = vrot.slane %v1334, %v2061
    %v2063 = vsel %vm619, %v2062, %v2058
    %v2064 = vlaneseq
    %v2065 = vshrl.u32 %v2064, 7
    %v2066 = vsub.s32 %v621, %v2065
    %v2067 = vrot.slane %v1336, %v2066
    %v2068 = vsel %vm626, %v2067, %v2063
    %v2069 = vlaneseq
    %v2070 = vshrl.u32 %v2069, 7
    %v2071 = vsub.s32 %v628, %v2070
    %v2072 = vrot.slane %v1338, %v2071
    %v2073 = vsel %vm633, %v2072, %v2068
    %v2074 = vlaneseq
    %v2075 = vshrl.u32 %v2074, 7
    %v2076 = vsub.s32 %v635, %v2075
    %v2077 = vrot.slane %v1340, %v2076
    %v2078 = vsel %vm640, %v2077, %v2073
    %v2079 = vlaneseq
    %v2080 = vshrl.u32 %v2079, 7
    %v2081 = vsub.s32 %v642, %v2080
    %v2082 = vrot.slane %v1342, %v2081
    %v2083 = vsel %vm647, %v2082, %v2078
    %v2084 = vlaneseq
    %v2085 = vshrl.u32 %v2084, 7
    %v2086 = vsub.s32 %v649, %v2085
    %v2087 = vrot.slane %v1344, %v2086
    %v2088 = vsel %vm654, %v2087, %v2083
    %v2089 = vlaneseq
    %v2090 = vshrl.u32 %v2089, 7
    %v2091 = vsub.s32 %v656, %v2090
    %v2092 = vrot.slane %v1346, %v2091
    %v2093 = vsel %vm661, %v2092, %v2088
    %v2094 = vlaneseq
    %v2095 = vshrl.u32 %v2094, 7
    %v2096 = vsub.s32 %v663, %v2095
    %v2097 = vrot.slane %v1348, %v2096
    %v2098 = vsel %vm668, %v2097, %v2093
    %v2099 = vlaneseq
    %v2100 = vshrl.u32 %v2099, 7
    %v2101 = vsub.s32 %v670, %v2100
    %v2102 = vrot.slane %v1350, %v2101
    %v2103 = vsel %vm675, %v2102, %v2098
    %v2104 = vlaneseq
    %v2105 = vshrl.u32 %v2104, 7
    %v2106 = vsub.s32 %v677, %v2105
    %v2107 = vrot.slane %v1352, %v2106
    %v2108 = vsel %vm682, %v2107, %v2103
    %v2109 = vlaneseq
    %v2110 = vshrl.u32 %v2109, 7
    %v2111 = vsub.s32 %v684, %v2110
    %v2112 = vrot.slane %v1354, %v2111
    %v2113 = vsel %vm689, %v2112, %v2108
    %v2114 = vlaneseq
    %v2115 = vshrl.u32 %v2114, 7
    %v2116 = vsub.s32 %v691, %v2115
    %v2117 = vrot.slane %v1356, %v2116
    %v2118 = vsel %vm696, %v2117, %v2113
    %v2119 = vlaneseq
    %v2120 = vshrl.u32 %v2119, 7
    %v2121 = vsub.s32 %v698, %v2120
    %v2122 = vrot.slane %v1358, %v2121
    %v2123 = vsel %vm703, %v2122, %v2118
    %v2124 = vlaneseq
    %v2125 = vshrl.u32 %v2124, 7
    %v2126 = vsub.s32 %v705, %v2125
    %v2127 = vrot.slane %v1360, %v2126
    %v2128 = vsel %vm710, %v2127, %v2123
    %vm2130 = vcmask 1040384
    %v2131 = vsel %vm2130, %v1456, %v1552
    %vm2132 = vcmask 1041408
    %v2133 = vsel %vm2132, %v2131, %v1648
    %vm2134 = vcmask 1042432
    %v2135 = vsel %vm2134, %v2133, %v1744
    %vm2136 = vcmask 1043456
    %v2137 = vsel %vm2136, %v2135, %v1840
    %vm2138 = vcmask 1044480
    %v2139 = vsel %vm2138, %v2137, %v1936
    %vm2140 = vcmask 1045504
    %v2141 = vsel %vm2140, %v2139, %v2032
    %vm2142 = vcmask 1046528
    %v2143 = vsel %vm2142, %v2141, %v2128
    %2145 = vset.pattern.permute.xlu0 0
    %2146 = vperm.xlu0 %2145, %v1361
    %v2147 = vpop.permute.xlu0 %2146
    %v2149 = vmul.f32 %v2147, %v2143
    %2150 = vst [vmem:[#allocation8] sm:$0xff] %v2149
    // Predicated region
    $region34: #{tpu_custom_call.1} parent=1 // pred_check
      _
    $region35: #{tpu_custom_call.1} parent=1 // pred_check_branch
      %2152 = sbr.rel (0) target = $region37
    $region36: #{tpu_custom_call.1} parent=1 // pred_region
      %s2154 = ssub.s32 128, 128
      %2155 = vsyncadd [#allocation4], %s2154
      %s2157 = sshll.u32 [#allocation8], 4
      %s2158 = int_to_ptr.vmem [resolvable:$true] %s2157
      %2160 = dma.vmem_to_hbm [thread:$0]  %s2158, 128, %s5, [#allocation4]
    $region37: #{tpu_custom_call.1} parent=1 // pred_fallthru
      _
    // Predicated region
    $region38: #{tpu_custom_call.1} parent=1 // pred_check
      _
    $region39: #{tpu_custom_call.1} parent=1 // pred_check_branch
      %2162 = sbr.rel (0) target = $region41
    $region40: #{tpu_custom_call.1} parent=1 // pred_region
      %s2164 = ssub.s32 16, 16
      %2165 = vsyncadd [#allocation10], %s2164
      %s2167 = sshll.u32 [#allocation9], 4
      %s2168 = int_to_ptr.vmem [resolvable:$true] %s2167
      %2170 = dma.vmem_to_hbm [thread:$0]  %s2168, 16, %s6, [#allocation10]
    $region41: #{tpu_custom_call.1} parent=1 // pred_fallthru
      _
    // Predicated region
    $region42: #{tpu_custom_call.1} parent=1 // pred_check
      _
    $region43: #{tpu_custom_call.1} parent=1 // pred_check_branch
      %2172 = sbr.rel (0) target = $region45
    $region44: #{tpu_custom_call.1} parent=1 // pred_region
      %2173 = dma.done [#allocation4], 128
    $region45: #{tpu_custom_call.1} parent=1 // pred_fallthru
      _
    // Predicated region
    $region46: #{tpu_custom_call.1} parent=1 // pred_check
      _
    $region47: #{tpu_custom_call.1} parent=1 // pred_check_branch
      %2175 = sbr.rel (0) target = $region49
    $region48: #{tpu_custom_call.1} parent=1 // pred_region
      %2176 = dma.done [#allocation10], 16
    $region49: #{tpu_custom_call.1} parent=1 // pred_fallthru
      _
    %2177 = vsyncpa [#allocation3], 1
    %2178 = vsyncpa [#allocation6], 1
    %2179 = vsyncpa [#allocation4], 1
    %2180 = vsyncpa [#allocation10], 1

</llo_original>
